<compile_context>
chip_gen: v7x
topology: tpu7x:2x2x1
jax: 0.10.0
libtpu: 0.0.40
codegen_flags: <defaults>
</compile_context>

<pallas_src>
import functools

import jax
import jax.numpy as jnp
from jax import lax
from jax.experimental import pallas as pl
from jax.experimental.pallas import tpu as pltpu


_LANES = 128          # lane-dense coord output width (cols 0..3 meaningful)
_NEG_FILL = -1e30     # padding fill for heatmap logits (exp -> 0)


def _round_up(x, m):
    return ((x + m - 1) // m) * m


def _is_pow2(x):
    return x > 0 and (x & (x - 1)) == 0


# ----------------------------------------------------------------------------
# Kernel 1: tiled softmax + 3D soft-argmax.
#   grid = (row tiles, V tiles); V is the reduction axis (online softmax).
#   One MXU matmul against an in-kernel-generated (tV, 128) grid does all three
#   marginalizations plus the softmax denominator (column 3 = 1).
# ----------------------------------------------------------------------------
def _softargmax_kernel(hm_ref, coord_ref, acc_ref, m_ref, *,
                       tile_v, log2_w, log2_h, width, height, depth):
    k = pl.program_id(1)

    @pl.when(k == 0)
    def _init():
        m_ref[...] = jnp.full(m_ref.shape, -jnp.inf, m_ref.dtype)
        acc_ref[...] = jnp.zeros(acc_ref.shape, acc_ref.dtype)

    # --- online softmax over the V (reduction) axis -------------------------
    s = hm_ref[...].astype(jnp.float32)                        # (tR, tV)
    m_old = m_ref[...]                                         # (tR, 1)
    m_new = jnp.maximum(m_old, jnp.max(s, axis=-1, keepdims=True))
    alpha = jnp.exp(m_old - m_new)                             # rescale factor
    # TODO(synk): on v6e/v7x the exp can be done in bf16 (cast before exp) to
    # halve EUP cost; kept f32 so it lowers identically on v5e too.
    p = jnp.exp(s - m_new).astype(jnp.bfloat16)                # (tR, tV) bf16

    # --- per-tile coordinate grid generated in-kernel (VPU shift/mask work;
    # no HBM stream, no 128-lane-padded (V,4) array).  Flat index order is
    # (d, h, w) with w fastest; columns = [x/W-0.5, y/H-0.5, z/D-0.5, 1, 0...].
    vloc = lax.broadcasted_iota(jnp.int32, (tile_v, _LANES), 0)
    v = vloc + k * tile_v
    col = lax.broadcasted_iota(jnp.int32, (tile_v, _LANES), 1)
    wi = v & (width - 1)
    hi = (v >> log2_w) & (height - 1)
    di = v >> (log2_w + log2_h)
    xf = wi.astype(jnp.float32) * (1.0 / width) - 0.5
    yf = hi.astype(jnp.float32) * (1.0 / height) - 0.5
    zf = di.astype(jnp.float32) * (1.0 / depth) - 0.5
    g = jnp.where(col == 0, xf,
        jnp.where(col == 1, yf,
        jnp.where(col == 2, zf,
        jnp.where(col == 3, 1.0, 0.0)))).astype(jnp.bfloat16)  # (tV, 128)

    acc_ref[...] = alpha * acc_ref[...] + jnp.dot(
        p, g, preferred_element_type=jnp.float32)              # (tR, 128) f32
    m_ref[...] = m_new

    @pl.when(k == pl.num_programs(1) - 1)
    def _finalize():
        acc = acc_ref[...]
        denom = acc[:, 3:4]                    # softmax denominator (col 3)
        coord_ref[...] = acc * (1.0 / denom)   # lane-dense unmasked store


def heatmap_softargmax(hm_flat, depth, height, width, *,
                       tile_rows=32, tile_v=512):
    """hm_flat: (R, V) heatmap logits. Returns (R, 3) f32 softmax-expectation
    coords in [-0.5, 0.5] (x, y, z), matching the reference soft-argmax."""
    assert _is_pow2(width) and _is_pow2(height) and _is_pow2(depth), (
        "in-kernel grid generation assumes power-of-two heatmap dims")
    # TODO(synk): for non-power-of-two dims, fall back to a precomputed grid.
    R, V = hm_flat.shape
    assert V == depth * height * width

    tile_rows = max(8, min(_round_up(tile_rows, 8), _round_up(R, 8)))
    tile_v = max(128, min(_round_up(tile_v, 128), _round_up(V, 128)))
    r_pad = _round_up(R, tile_rows)
    v_pad = _round_up(V, tile_v)

    # bf16 halves the HBM read of the dominant tensor; accumulation stays f32.
    hm = hm_flat.astype(jnp.bfloat16)
    if (r_pad, v_pad) != (R, V):
        hm = jnp.pad(hm, ((0, r_pad - R), (0, v_pad - V)),
                     constant_values=_NEG_FILL)

    kernel = functools.partial(
        _softargmax_kernel,
        tile_v=tile_v,
        log2_w=width.bit_length() - 1,
        log2_h=height.bit_length() - 1,
        width=width, height=height, depth=depth)

    # Explicit VMEM budget (double-buffered bf16 hm tiles + resident coord
    # output + scratch), capped well below v7x's 64 MiB physical VMEM and above
    # v5e's 16 MiB scoped default when tiles are large.
    need = (2 * tile_rows * tile_v * 2          # hm tiles, bf16, 2 buffers
            + 2 * tile_rows * _LANES * 4        # coord output buffers
            + tile_rows * _LANES * 4            # f32 accumulator scratch
            + tile_rows * 4)                    # running-max scratch
    vmem_limit = int(min(32 * 1024 * 1024, max(2 * 1024 * 1024, 4 * need)))

    coords = pl.pallas_call(
        kernel,
        out_shape=jax.ShapeDtypeStruct((r_pad, _LANES), jnp.float32),
        grid_spec=pltpu.PrefetchScalarGridSpec(
            num_scalar_prefetch=0,
            grid=(r_pad // tile_rows, v_pad // tile_v),
            in_specs=[pl.BlockSpec((tile_rows, tile_v), lambda i, k: (i, k))],
            out_specs=pl.BlockSpec((tile_rows, _LANES), lambda i, k: (i, 0)),
            scratch_shapes=[pltpu.VMEM((tile_rows, _LANES), jnp.float32),
                            pltpu.VMEM((tile_rows, 1), jnp.float32)],
        ),
        compiler_params=pltpu.CompilerParams(
            # rows split across TensorCores (v7x megacore); V is the online
            # softmax reduction and must stay sequential.
            dimension_semantics=("parallel", "arbitrary"),
            vmem_limit_bytes=vmem_limit),
        cost_estimate=pl.CostEstimate(
            flops=2 * r_pad * v_pad * 4,
            transcendentals=r_pad * v_pad,
            bytes_accessed=r_pad * v_pad * 2 + r_pad * _LANES * 4),
    )(hm)
    return coords[:R, :3]


# ----------------------------------------------------------------------------
# Kernel 2: fused regression heads (decshape | deckid | decF | deccam).
# Tiny GEMM kept as its own single-step pallas_call (output padded to 256
# lanes; init_shape / init_cam folded into the bias).
# ----------------------------------------------------------------------------
def _heads_kernel(x_ref, w_ref, b_ref, o_ref):
    o_ref[...] = (jnp.dot(x_ref[...], w_ref[...],
                          preferred_element_type=jnp.float32) + b_ref[...])


def heads_forward(x0, w_pad, b_pad):
    B, F = x0.shape
    OUT = w_pad.shape[1]
    return pl.pallas_call(
        _heads_kernel,
        out_shape=jax.ShapeDtypeStruct((B, OUT), jnp.float32),
        grid_spec=pltpu.PrefetchScalarGridSpec(
            num_scalar_prefetch=0,
            grid=(1,),
            in_specs=[pl.BlockSpec((B, F), lambda i: (0, 0)),
                      pl.BlockSpec((F, OUT), lambda i: (0, 0)),
                      pl.BlockSpec((1, OUT), lambda i: (0, 0))],
            out_specs=pl.BlockSpec((B, OUT), lambda i: (0, 0)),
        ),
        compiler_params=pltpu.CompilerParams(
            dimension_semantics=("arbitrary",)),
    )(x0, w_pad, b_pad)


# ----------------------------------------------------------------------------
# Parameter initialisation (deterministic, synthetic stand-in for checkpoints)
# ----------------------------------------------------------------------------
def init_params(key, feat_dim, f_dim=24, out_pad=256):
    head_dims = [10, 1, f_dim * 9, 3]  # decshape, deckid, decF, deccam
    bound = 1.0 / float(feat_dim) ** 0.5
    ws, bs = [], []
    for i, d in enumerate(head_dims):
        kw, kb = jax.random.split(jax.random.fold_in(key, i))
        ws.append(jax.random.uniform(kw, (feat_dim, d), jnp.float32, -bound, bound))
        bs.append(jax.random.uniform(kb, (d,), jnp.float32, -bound, bound))
    # stand-in for h36m_mean_beta.npy (deterministic)
    init_shape = 0.1 * jax.random.normal(jax.random.fold_in(key, 100), (10,),
                                         dtype=jnp.float32)
    init_cam = jnp.array([0.9, 0.0, 0.0], jnp.float32)

    w = jnp.concatenate(ws, axis=1)                 # (feat_dim, 230)
    b = jnp.concatenate(bs, axis=0)                 # (230,)
    out_dim = w.shape[1]

    # Fold init_shape / init_cam into the bias.
    b = b.at[0:10].add(init_shape)
    b = b.at[out_dim - 3:out_dim].add(init_cam)

    # Pad output dim to 256 lanes for unmasked, MXU-aligned stores.
    pad = out_pad - out_dim
    w_pad = jnp.pad(w, ((0, 0), (0, pad)))
    b_pad = jnp.pad(b, (0, pad)).reshape(1, out_pad)
    return dict(w=w_pad, b=b_pad, out_dim=out_dim)


# ----------------------------------------------------------------------------
# Forward pass (thin JAX glue around the two Pallas kernels)
# ----------------------------------------------------------------------------
def mf_heatmap_xyz_forward(backbone_out, backbone_feat, params, *,
                           num_joints, depth_dim, height_dim, width_dim,
                           focal_length, input_size, depth_factor, f_dim=24):
    B = backbone_out.shape[0]
    jm1 = num_joints - 1
    V = depth_dim * height_dim * width_dim

    # out.reshape(B, J-1, -1) -> lane-dense (B*(J-1), D*H*W)
    hm_flat = backbone_out.reshape(B * jm1, V)
    coords = heatmap_softargmax(hm_flat, depth_dim, height_dim, width_dim)
    pred_coord_from_hm = coords.reshape(B, jm1, 3)

    head_out = heads_forward(backbone_feat, params["w"], params["b"])
    out_dim = params["out_dim"]
    pred_shape = head_out[:, 0:10]                   # init_shape already folded
    pred_kid = head_out[:, 10:11]
    pred_F = head_out[:, 11:11 + f_dim * 9]
    pred_cam = head_out[:, 11 + f_dim * 9:out_dim]   # init_cam already folded

    pred_rel_jts = pred_coord_from_hm * depth_factor
    zero_root = jnp.zeros((B, 1, 3), pred_rel_jts.dtype)
    pred_rel_jts = jnp.concatenate([zero_root, pred_rel_jts], axis=1)

    # Matches the reference exactly: hard-coded 256 scale and 1e-6 eps.
    cam_depth = 2.0 * focal_length / (256.0 * pred_cam[:, 0] + 1e-6)
    transl = jnp.stack([pred_cam[:, 1], pred_cam[:, 2], cam_depth],
                       axis=-1)[:, None, :]

    # Reference K = diag(f, f, 1) with zero principal point -> the batched
    # einsum collapses to a scalar scale of the normalized xy.
    hm_abs_jts = pred_rel_jts + transl
    hm_2d_jts = (hm_abs_jts[..., :2] / hm_abs_jts[..., 2:3]) * (
        focal_length / input_size)

    # TODO(synk): SMPL_layer.propose-derived outputs are intentionally omitted.
    return dict(
        pred_F=pred_F.reshape(B, f_dim, 3, 3),
        pred_shape=pred_shape,
        pred_coord_from_hm=pred_coord_from_hm.reshape(B, -1),
        pred_rel_jts=pred_rel_jts,
        hm_2d_jts=hm_2d_jts,
        transl=transl,
        pred_cam=pred_cam,
        kid_betas=pred_kid,
    )


if __name__ == "__main__":
    B = 2
    NUM_JOINTS = 25            # J-1 = 24 heatmap joints
    JM1 = NUM_JOINTS - 1
    D, H, W = 8, 16, 16        # DEPTH_DIM, HEATMAP_SIZE
    FEAT_DIM = 256             # scaled-down backbone feature width (orig 2048)
    FOCAL_LENGTH = 1000.0
    INPUT_SIZE = 256.0         # max(IMAGE_SIZE)
    DEPTH_FACTOR = 2.0         # BBOX_3D_SHAPE (2000,2000,2000) * 0.001

    key = jax.random.PRNGKey(0)
    k_out, k_feat, k_par = jax.random.split(key, 3)

    # Stand-ins for HRNet outputs: heatmap head (NCHW, C = (J-1)*D) + feature.
    backbone_out = jax.random.normal(k_out, (B, JM1 * D, H, W), jnp.float32)
    backbone_feat = jax.random.normal(k_feat, (B, FEAT_DIM), jnp.float32)
    params = init_params(k_par, FEAT_DIM)

    out = mf_heatmap_xyz_forward(
        backbone_out, backbone_feat, params,
        num_joints=NUM_JOINTS, depth_dim=D, height_dim=H, width_dim=W,
        focal_length=FOCAL_LENGTH, input_size=INPUT_SIZE,
        depth_factor=DEPTH_FACTOR)
    jax.block_until_ready(out)

    # shape checks
    assert out["pred_F"].shape == (B, 24, 3, 3)
    assert out["pred_shape"].shape == (B, 10)
    assert out["pred_cam"].shape == (B, 3)
    assert out["pred_rel_jts"].shape == (B, JM1 + 1, 3)
    assert out["hm_2d_jts"].shape == (B, JM1 + 1, 2)

    # numerical check of the tiled online-softmax soft-argmax vs a pure-JAX ref
    hm = backbone_out.reshape(B * JM1, D, H, W).astype(jnp.float32)
    p = jax.nn.softmax(hm.reshape(B * JM1, -1), axis=-1).reshape(hm.shape)
    gx = jnp.arange(W, dtype=jnp.float32) / W - 0.5
    gy = jnp.arange(H, dtype=jnp.float32) / H - 0.5
    gz = jnp.arange(D, dtype=jnp.float32) / D - 0.5
    ref = jnp.stack([jnp.einsum('ndhw,w->n', p, gx),
                     jnp.einsum('ndhw,h->n', p, gy),
                     jnp.einsum('ndhw,d->n', p, gz)], axis=-1)
    got = out["pred_coord_from_hm"].reshape(B * JM1, 3)
    assert bool(jnp.all(jnp.abs(got) <= 0.5 + 1e-4))
    assert bool(jnp.max(jnp.abs(got - ref)) < 2e-2)

    # heads GEMM check (init_shape / init_cam folded into the bias)
    ref_heads = jnp.dot(backbone_feat, params["w"],
                        precision="highest") + params["b"]
    assert bool(jnp.max(jnp.abs(out["pred_shape"] - ref_heads[:, :10])) < 1e-2)
    assert bool(jnp.max(jnp.abs(out["pred_cam"]
                                - ref_heads[:, params["out_dim"] - 3:
                                            params["out_dim"]])) < 1e-2)

    print("KERNEL_OK")
</pallas_src>

<mosaic_0001>
module attributes {stable_mosaic.version = 11 : i64} {
  func.func @_softargmax_kernel(%arg0: i32, %arg1: i32, %arg2: memref<32x512xbf16, #tpu.memory_space<vmem>>, %arg3: memref<32x128xf32, #tpu.memory_space<vmem>>, %arg4: memref<32x128xf32, #tpu.memory_space<vmem>>, %arg5: memref<32x1xf32, #tpu.memory_space<vmem>>) attributes {dimension_semantics = [#tpu.dimension_semantics<parallel>, #tpu.dimension_semantics<arbitrary>], iteration_bounds = array<i64: 2, 4>, scalar_prefetch = 0 : i64, scratch_operands = 2 : i64, tpu.core_type = #tpu.core_type<tc>, window_params = [{transform_indices = @transform_0, window_bounds = array<i64: 32, 512>}, {transform_indices = @transform_1, window_bounds = array<i64: 32, 128>}]} {
    %c0_i32 = arith.constant 0 : i32
    %0 = arith.cmpi eq, %arg1, %c0_i32 : i32
    %1 = arith.extui %0 : i1 to i32
    %c0_i32_0 = arith.constant 0 : i32
    %2 = arith.cmpi ne, %1, %c0_i32_0 : i32
    scf.if %2 {
      %cst_23 = arith.constant 0xFF800000 : f32
      %68 = vector.broadcast %cst_23 : f32 to vector<32x1xf32>
      %c0_24 = arith.constant 0 : index
      %c0_25 = arith.constant 0 : index
      %69 = vector.load %arg5[%c0_24, %c0_25] : memref<32x1xf32, #tpu.memory_space<vmem>>, vector<32x1xf32>
      tpu.vector_store %arg5[%c0_24, %c0_25], %68 {strides = array<i32>} : memref<32x1xf32, #tpu.memory_space<vmem>>, vector<32x1xf32>,
      %cst_26 = arith.constant 0.000000e+00 : f32
      %70 = vector.broadcast %cst_26 : f32 to vector<32x128xf32>
      %c0_27 = arith.constant 0 : index
      %c0_28 = arith.constant 0 : index
      %71 = vector.load %arg4[%c0_27, %c0_28] : memref<32x128xf32, #tpu.memory_space<vmem>>, vector<32x128xf32>
      tpu.vector_store %arg4[%c0_27, %c0_28], %70 {strides = array<i32>} : memref<32x128xf32, #tpu.memory_space<vmem>>, vector<32x128xf32>,
    } else {
    }
    %c0 = arith.constant 0 : index
    %c0_1 = arith.constant 0 : index
    %3 = vector.load %arg2[%c0, %c0_1] : memref<32x512xbf16, #tpu.memory_space<vmem>>, vector<32x512xbf16>
    %4 = arith.extf %3 : vector<32x512xbf16> to vector<32x512xf32>
    %c0_2 = arith.constant 0 : index
    %c0_3 = arith.constant 0 : index
    %5 = vector.load %arg5[%c0_2, %c0_3] : memref<32x1xf32, #tpu.memory_space<vmem>>, vector<32x1xf32>
    %cst = arith.constant dense<0xFF800000> : vector<32xf32>
    %6 = vector.multi_reduction <maximumf>, %4, %cst [1] : vector<32x512xf32> to vector<32xf32>
    %7 = vector.shape_cast %6 : vector<32xf32> to vector<32x1xf32>
    %8 = arith.maximumf %5, %7 : vector<32x1xf32>
    %9 = arith.subf %5, %8 : vector<32x1xf32>
    %10 = math.exp %9 : vector<32x1xf32>
    %11 = vector.broadcast %8 : vector<32x1xf32> to vector<32x512xf32>
    %12 = arith.subf %4, %11 : vector<32x512xf32>
    %13 = math.exp %12 : vector<32x512xf32>
    %14 = arith.truncf %13 : vector<32x512xf32> to vector<32x512xbf16>
    %15 = tpu.iota {dimensions = array<i32: 0>} : vector<512x128xi32>
    %c512_i32 = arith.constant 512 : i32
    %16 = arith.muli %arg1, %c512_i32 : i32
    %17 = vector.broadcast %16 : i32 to vector<512x128xi32>
    %18 = arith.addi %15, %17 : vector<512x128xi32>
    %19 = tpu.iota {dimensions = array<i32: 1>} : vector<512x128xi32>
    %c15_i32 = arith.constant 15 : i32
    %20 = vector.broadcast %c15_i32 : i32 to vector<512x128xi32>
    %21 = arith.andi %18, %20 : vector<512x128xi32>
    %c4_i32 = arith.constant 4 : i32
    %22 = vector.broadcast %c4_i32 : i32 to vector<512x128xi32>
    %23 = arith.shrsi %18, %22 : vector<512x128xi32>
    %c15_i32_4 = arith.constant 15 : i32
    %24 = vector.broadcast %c15_i32_4 : i32 to vector<512x128xi32>
    %25 = arith.andi %23, %24 : vector<512x128xi32>
    %c8_i32 = arith.constant 8 : i32
    %26 = vector.broadcast %c8_i32 : i32 to vector<512x128xi32>
    %27 = arith.shrsi %18, %26 : vector<512x128xi32>
    %28 = arith.sitofp %21 : vector<512x128xi32> to vector<512x128xf32>
    %cst_5 = arith.constant 6.250000e-02 : f32
    %29 = vector.broadcast %cst_5 : f32 to vector<512x128xf32>
    %30 = arith.mulf %28, %29 : vector<512x128xf32>
    %cst_6 = arith.constant 5.000000e-01 : f32
    %31 = vector.broadcast %cst_6 : f32 to vector<512x128xf32>
    %32 = arith.subf %30, %31 : vector<512x128xf32>
    %33 = arith.sitofp %25 : vector<512x128xi32> to vector<512x128xf32>
    %cst_7 = arith.constant 6.250000e-02 : f32
    %34 = vector.broadcast %cst_7 : f32 to vector<512x128xf32>
    %35 = arith.mulf %33, %34 : vector<512x128xf32>
    %cst_8 = arith.constant 5.000000e-01 : f32
    %36 = vector.broadcast %cst_8 : f32 to vector<512x128xf32>
    %37 = arith.subf %35, %36 : vector<512x128xf32>
    %38 = arith.sitofp %27 : vector<512x128xi32> to vector<512x128xf32>
    %cst_9 = arith.constant 1.250000e-01 : f32
    %39 = vector.broadcast %cst_9 : f32 to vector<512x128xf32>
    %40 = arith.mulf %38, %39 : vector<512x128xf32>
    %cst_10 = arith.constant 5.000000e-01 : f32
    %41 = vector.broadcast %cst_10 : f32 to vector<512x128xf32>
    %42 = arith.subf %40, %41 : vector<512x128xf32>
    %c0_i32_11 = arith.constant 0 : i32
    %43 = vector.broadcast %c0_i32_11 : i32 to vector<512x128xi32>
    %44 = arith.cmpi eq, %19, %43 : vector<512x128xi32>
    %c1_i32 = arith.constant 1 : i32
    %45 = vector.broadcast %c1_i32 : i32 to vector<512x128xi32>
    %46 = arith.cmpi eq, %19, %45 : vector<512x128xi32>
    %c2_i32 = arith.constant 2 : i32
    %47 = vector.broadcast %c2_i32 : i32 to vector<512x128xi32>
    %48 = arith.cmpi eq, %19, %47 : vector<512x128xi32>
    %c3_i32 = arith.constant 3 : i32
    %49 = vector.broadcast %c3_i32 : i32 to vector<512x128xi32>
    %50 = arith.cmpi eq, %19, %49 : vector<512x128xi32>
    %cst_12 = arith.constant 1.000000e+00 : f32
    %cst_13 = arith.constant 0.000000e+00 : f32
    %51 = vector.broadcast %cst_12 : f32 to vector<512x128xf32>
    %52 = vector.broadcast %cst_13 : f32 to vector<512x128xf32>
    %53 = arith.select %50, %51, %52 : vector<512x128xi1>, vector<512x128xf32>
    %54 = arith.select %48, %42, %53 : vector<512x128xi1>, vector<512x128xf32>
    %55 = arith.select %46, %37, %54 : vector<512x128xi1>, vector<512x128xf32>
    %56 = arith.select %44, %32, %55 : vector<512x128xi1>, vector<512x128xf32>
    %57 = arith.truncf %56 : vector<512x128xf32> to vector<512x128xbf16>
    %c0_14 = arith.constant 0 : index
    %c0_15 = arith.constant 0 : index
    %58 = vector.load %arg4[%c0_14, %c0_15] : memref<32x128xf32, #tpu.memory_space<vmem>>, vector<32x128xf32>
    %59 = vector.broadcast %10 : vector<32x1xf32> to vector<32x128xf32>
    %60 = arith.mulf %59, %58 : vector<32x128xf32>
    %cst_16 = arith.constant dense<0.000000e+00> : vector<32x128xf32>
    %61 = tpu.matmul %14, %57, %cst_16 {dimension_numbers = #tpu.dot_dimension_numbers<[1], [0], [0], [1], [0, 0, 1, 1], [], []>} : vector<32x512xbf16>, vector<512x128xbf16>, vector<32x128xf32> -> vector<32x128xf32>
    %62 = arith.addf %60, %61 : vector<32x128xf32>
    %c0_17 = arith.constant 0 : index
    %c0_18 = arith.constant 0 : index
    %63 = vector.load %arg4[%c0_17, %c0_18] : memref<32x128xf32, #tpu.memory_space<vmem>>, vector<32x128xf32>
    tpu.vector_store %arg4[%c0_17, %c0_18], %62 {strides = array<i32>} : memref<32x128xf32, #tpu.memory_space<vmem>>, vector<32x128xf32>,
    %c0_19 = arith.constant 0 : index
    %c0_20 = arith.constant 0 : index
    %64 = vector.load %arg5[%c0_19, %c0_20] : memref<32x1xf32, #tpu.memory_space<vmem>>, vector<32x1xf32>
    tpu.vector_store %arg5[%c0_19, %c0_20], %8 {strides = array<i32>} : memref<32x1xf32, #tpu.memory_space<vmem>>, vector<32x1xf32>,
    %c3_i32_21 = arith.constant 3 : i32
    %65 = arith.cmpi eq, %arg1, %c3_i32_21 : i32
    %66 = arith.extui %65 : i1 to i32
    %c0_i32_22 = arith.constant 0 : i32
    %67 = arith.cmpi ne, %66, %c0_i32_22 : i32
    scf.if %67 {
      %c0_23 = arith.constant 0 : index
      %c0_24 = arith.constant 0 : index
      %68 = vector.load %arg4[%c0_23, %c0_24] : memref<32x128xf32, #tpu.memory_space<vmem>>, vector<32x128xf32>
      %69 = vector.extract_strided_slice %68 {offsets = [0, 3], sizes = [32, 1], strides = [1, 1]} : vector<32x128xf32> to vector<32x1xf32>
      %cst_25 = arith.constant 1.000000e+00 : f32
      %70 = vector.broadcast %cst_25 : f32 to vector<32x1xf32>
      %71 = arith.divf %70, %69 : vector<32x1xf32>
      %72 = vector.broadcast %71 : vector<32x1xf32> to vector<32x128xf32>
      %73 = arith.mulf %68, %72 : vector<32x128xf32>
      %c0_26 = arith.constant 0 : index
      %c0_27 = arith.constant 0 : index
      %74 = vector.load %arg3[%c0_26, %c0_27] : memref<32x128xf32, #tpu.memory_space<vmem>>, vector<32x128xf32>
      tpu.vector_store %arg3[%c0_26, %c0_27], %73 {strides = array<i32>} : memref<32x128xf32, #tpu.memory_space<vmem>>, vector<32x128xf32>,
    } else {
    }
    return
  }
  func.func @transform_0(%arg0: i32, %arg1: i32) -> (i32, i32) {
    %c0_i32 = arith.constant 0 : i32
    return %arg0, %arg1 : i32, i32
  }
  func.func @transform_1(%arg0: i32, %arg1: i32) -> (i32, i32) {
    %c0_i32 = arith.constant 0 : i32
    %c0_i32_0 = arith.constant 0 : i32
    return %arg0, %c0_i32 : i32, i32
  }
}

</mosaic_0001>

<llo_original>
// kernel: tpu_custom_call.1
$region0: #{tpu_custom_call.1}
  #allocation0 [shape = 'u32[]', space=smem, size = 0x4, offset = 0x4, fixed_abs, tag = 'smem constant byte address 0x4 - core index']
  #allocation1 [shape = 'u32[144,128]{1,0:T(1,128)}', space=vmem, size = 0x12000, scoped, tag = 'internal scratch']
  #allocation2 [shape = 'f32[32,128]{1,0:T(8,128)}', space=vmem, size = 0x4000, scoped, tag = 'scratch operand']
  #allocation3 [shape = 'f32[32,1]{1,0:T(8,128)}', space=vmem, size = 0x4000, scoped, tag = 'scratch operand']
  %s0 = inlined_call_operand.hbm [shape: bf16[64,2048], index: 0, kind: input, shape index: {}]
  %s1 = inlined_call_operand.hbm [shape: f32[64,128], index: 1, kind: output, shape index: {}]
  %s2 = sld [smem:[#allocation0]]
  $region49: #{tpu_custom_call.1} parent=0
    _
  %s4 = ssub.s32 1, %s2
  %s5 = scalar_select 0, %s4, %s2
  $region1: #{tpu_custom_call.1} parent=0
    #allocation4 [shape = 'u8[65536]{0}', space=vmem, size = 0x10000, scoped, tag = 'input window, operand 0']
    #allocation5 [shape = 's32[2]{0}', space=sflag, size = 0x8, scoped, tag = 'scoped memory for tpu_custom_call.1']
    #allocation6 [shape = 's32[2]{0}', space=sflag, size = 0x8, scoped, tag = 'scoped memory for tpu_custom_call.1']
    #allocation7 [shape = 'u8[32768]{0}', space=vmem, size = 0x8000, scoped, tag = 'output window, operand 0']
    %6 = vsyncpa [#allocation5], 0
    %s7 = scalar_lea.sflag [#allocation5], 1
    %8 = vsyncpa %s7, 0
    %9 = vsyncpa [#allocation6], 0
    %s10 = scalar_lea.sflag [#allocation6], 1
    %11 = vsyncpa %s10, 0
    loop: start=0, step=1, limit=10
    $region2: #{tpu_custom_call.1} parent=1 // loop_pre_header
      _
    $region3: #{tpu_custom_call.1} parent=1 // loop_header
      %s13 = sphi 0, %s17
      %p14 = scmp.ge.s32.totalorder %s13, 10
      %s20 = sphi 0, %s32
      %s21 = sphi 0, %s28
      %s22 = sphi 0, %s20
      %s23 = sphi 0, %s21
      %s24 = sphi 0, %s22
      %s25 = sphi 0, %s23
      %s37 = sphi 0, %s39
      %s40 = sphi 0, %s37
      %s41 = sphi 0, %s40
      %s57 = sphi 0, %s41
      %s63 = sphi 0, %s65
      %s66 = sphi 0, %s63
      %s67 = sphi 0, %s66
      %s83 = sphi 0, %s67
    $region4: #{tpu_custom_call.1} parent=1 // loop_header_branch
      %16 = sbr.rel (%p14) target = $region8
    $region5: #{tpu_custom_call.1} parent=1 // loop_body
      %s18 = ssub.s32 %s13, 1
      %s19 = ssub.s32 %s13, 2
      %s26 = sadd.s32 1, %s21
      %p27 = scmp.ge.s32.totalorder %s26, 4
      %s28 = scalar_select %p27, 0, %s26
      %s29 = sadd.s32 1, %s20
      %s30 = scalar_select %p27, %s29, %s20
      %p31 = scmp.ge.s32.totalorder %s30, 2
      %s32 = scalar_select %p31, 0, %s30
      %s33 = ssub.s32 %s20, %s32
      %s34 = ssub.s32 %s21, %s28
      %s35 = sor.u32 %s33, %s34
      %p36 = scmp.eq.s32.totalorder %s35, 0
      %s38 = sadd.s32 %s37, 1
      %s39 = scalar_select %p36, %s37, %s38
      %p42 = pneg %p36
      %p43 = scmp.eq.s32.totalorder %s13, 7
      %p44 = por %p42, %p43
      %p45 = scmp.ne.s32.totalorder %s37, %s40
      %p46 = scmp.eq.s32.totalorder %s13, 0
      %p47 = por %p45, %p46
      %p48 = scmp.ne.s32.totalorder %s37, %s40
      %p49 = scmp.eq.s32.totalorder %s18, 7
      %p50 = por %p48, %p49
      %p51 = scmp.ne.s32.totalorder %s40, %s41
      %p52 = scmp.eq.s32.totalorder %s18, 0
      %p53 = por %p51, %p52
      %p54 = scmp.ne.s32.totalorder %s40, %s41
      %p55 = scmp.eq.s32.totalorder %s19, 7
      %p56 = por %p54, %p55
      %p58 = scmp.ne.s32.totalorder %s41, %s57
      %p59 = scmp.eq.s32.totalorder %s19, 0
      %p60 = por %p58, %p59
      %s61 = ssub.s32 %s20, %s32
      %p62 = scmp.eq.s32.totalorder %s61, 0
      %s64 = sadd.s32 %s63, 1
      %s65 = scalar_select %p62, %s63, %s64
      %p68 = pneg %p62
      %p69 = scmp.eq.s32.totalorder %s13, 7
      %p70 = por %p68, %p69
      %p71 = scmp.ne.s32.totalorder %s63, %s66
      %p72 = scmp.eq.s32.totalorder %s13, 0
      %p73 = por %p71, %p72
      %p74 = scmp.ne.s32.totalorder %s63, %s66
      %p75 = scmp.eq.s32.totalorder %s18, 7
      %p76 = por %p74, %p75
      %p77 = scmp.ne.s32.totalorder %s66, %s67
      %p78 = scmp.eq.s32.totalorder %s18, 0
      %p79 = por %p77, %p78
      %p80 = scmp.ne.s32.totalorder %s66, %s67
      %p81 = scmp.eq.s32.totalorder %s19, 7
      %p82 = por %p80, %p81
      %p84 = scmp.ne.s32.totalorder %s67, %s83
      %p85 = scmp.eq.s32.totalorder %s19, 0
      %p86 = por %p84, %p85
      %p87 = scmp.le.s32.totalorder 1, %s13
      %p88 = scmp.lt.s32.totalorder %s13, 9
      %p89 = pnand %p87, %p88
      %p90 = pneg %p89
      // Predicated region
      $region9: #{tpu_custom_call.1} parent=5 // pred_check
        _
      $region10: #{tpu_custom_call.1} parent=5 // pred_check_branch
        %92 = sbr.rel (%p89) target = $region12
      $region11: #{tpu_custom_call.1} parent=5 // pred_region
        %s93 = ssub.s32 %s13, 1
      $region12: #{tpu_custom_call.1} parent=5 // pred_fallthru
        _
      %p94 = scmp.lt.s32.totalorder %s13, 8
      // Predicated region
      $region13: #{tpu_custom_call.1} parent=5 // pred_check
        %p95 = pneg %p94
      $region14: #{tpu_custom_call.1} parent=5 // pred_check_branch
        %97 = sbr.rel (%p95) target = $region16
      $region15: #{tpu_custom_call.1} parent=5 // pred_region
        // Predicated region
        $region17: #{tpu_custom_call.1} parent=15 // pred_check
          %p98 = pneg %p47
        $region18: #{tpu_custom_call.1} parent=15 // pred_check_branch
          %100 = sbr.rel (%p98) target = $region20
        $region19: #{tpu_custom_call.1} parent=15 // pred_region
          %s101 = sand.u32 %s37, 1
          %s102 = scalar_lea.sflag [#allocation5], %s101
          %s103 = sand.u32 %s37, 1
          %s104 = smul.addr %s103, 64
          %s105 = scalar_lea.vmem [#allocation4], %s104
          %s106 = smul.u32 4, %s20
          %s107 = smul.u32 4, %s21
          %s109 = ssub.s32 1024, 1024
          %110 = vsyncadd %s102, %s109
          %s111 = smul.addr %s106, 16
          %s112 = sadd.s32 %s107, %s111
          %s113 = smul.addr %s112, 64
          %s114 = scalar_lea.hbm %s0, %s113
          %s115 = sshll.u32 %s105, 4
          %s116 = int_to_ptr.vmem [resolvable:$true] %s115
          %121 = dma.hbm_to_vmem [thread:$0]  %s114, 1024, %s116, %s102, 1024, 256, 16
        $region20: #{tpu_custom_call.1} parent=15 // pred_fallthru
          _
      $region16: #{tpu_custom_call.1} parent=5 // pred_fallthru
        _
      %p122 = scmp.le.s32.totalorder 1, %s13
      %p123 = scmp.lt.s32.totalorder %s13, 9
      %p124 = pnand %p122, %p123
      %p125 = pneg %p124
      // Predicated region
      $region21: #{tpu_custom_call.1} parent=5 // pred_check
        _
      $region22: #{tpu_custom_call.1} parent=5 // pred_check_branch
        %127 = sbr.rel (%p124) target = $region24
      $region23: #{tpu_custom_call.1} parent=5 // pred_region
        %s128 = ssub.s32 %s13, 1
        %s129 = sand.u32 %s40, 1
        %s130 = scalar_lea.sflag [#allocation5], %s129
        %s131 = sand.u32 %s40, 1
        %s132 = smul.addr %s131, 64
        %s133 = scalar_lea.vmem [#allocation4], %s132
        // Predicated region
        $region25: #{tpu_custom_call.1} parent=23 // pred_check
          %p134 = pneg %p53
        $region26: #{tpu_custom_call.1} parent=23 // pred_check_branch
          %136 = sbr.rel (%p134) target = $region28
        $region27: #{tpu_custom_call.1} parent=23 // pred_region
          %137 = dma.done %s130, 1024
        $region28: #{tpu_custom_call.1} parent=23 // pred_fallthru
          _
        %s138 = sand.u32 %s40, 1
        %s139 = scalar_lea.sflag [#allocation5], %s138
        %s140 = sand.u32 %s40, 1
        %s141 = smul.addr %s140, 64
        %s142 = scalar_lea.vmem [#allocation4], %s141
        %p143 = pneg %p53
        %p144 = pneg %p50
        %p145 = pneg %p79
        %p146 = pneg %p76
        %s147 = sand.u32 %s66, 1
        %s148 = scalar_lea.sflag [#allocation6], %s147
        %s149 = sand.u32 %s66, 1
        %s150 = smul.addr %s149, 32
        %s151 = scalar_lea.vmem [#allocation7], %s150
        %s152 = smul.u32 4, %s22
        %s153 = smul.u32 4, %s23
        %s154 = smul.u32 4, %s22
        %p156 = scmp.eq.s32.totalorder %s23, 0
        // Predicated region
        $region29: #{tpu_custom_call.1} parent=23 // pred_check
          %p157 = pneg %p156
        $region30: #{tpu_custom_call.1} parent=23 // pred_check_branch
          %159 = sbr.rel (%p157) target = $region32
        $region31: #{tpu_custom_call.1} parent=23 // pred_region
          %vm160 = vcmask 7168
          %161 = vst.msk [vmem:[#allocation3] sm:$0xff] %vm160, -inf
          %162 = vst.msk [vmem:[#allocation3 + $0x8] sm:$0xff] %vm160, -inf
          %163 = vst.msk [vmem:[#allocation3 + $0x10] sm:$0xff] %vm160, -inf
          %164 = vst.msk [vmem:[#allocation3 + $0x18] sm:$0xff] %vm160, -inf
          %165 = vst [vmem:[#allocation2] sm:$0xff] 0.0
          %166 = vst [vmem:[#allocation2 + $0x8] sm:$0xff] 0.0
          %167 = vst [vmem:[#allocation2 + $0x10] sm:$0xff] 0.0
          %168 = vst [vmem:[#allocation2 + $0x18] sm:$0xff] 0.0
        $region32: #{tpu_custom_call.1} parent=23 // pred_fallthru
          _
        %v169 = vld [vmem:[%s133] sm:$0xff]
        %v170 = vld [vmem:[%s133 + $0x8] sm:$0xff]
        %v171 = vld [vmem:[%s133 + $0x10] sm:$0xff]
        %v172 = vld [vmem:[%s133 + $0x18] sm:$0xff]
        %v173 = vld [vmem:[%s133 + $0x20] sm:$0xff]
        %v174 = vld [vmem:[%s133 + $0x28] sm:$0xff]
        %v175 = vld [vmem:[%s133 + $0x30] sm:$0xff]
        %v176 = vld [vmem:[%s133 + $0x38] sm:$0xff]
        %v177 = vunpack.c.l.bf16 %v169
        %v178 = vunpack.c.h.bf16 %v169
        %v179 = vunpack.c.l.bf16 %v170
        %v180 = vunpack.c.h.bf16 %v170
        %v181 = vunpack.c.l.bf16 %v171
        %v182 = vunpack.c.h.bf16 %v171
        %v183 = vunpack.c.l.bf16 %v172
        %v184 = vunpack.c.h.bf16 %v172
        %v185 = vunpack.c.l.bf16 %v173
        %v186 = vunpack.c.h.bf16 %v173
        %v187 = vunpack.c.l.bf16 %v174
        %v188 = vunpack.c.h.bf16 %v174
        %v189 = vunpack.c.l.bf16 %v175
        %v190 = vunpack.c.h.bf16 %v175
        %v191 = vunpack.c.l.bf16 %v176
        %v192 = vunpack.c.h.bf16 %v176
        %v193 = vld [vmem:[#allocation3] sm:$0xff]
        %v194 = vld [vmem:[#allocation3 + $0x8] sm:$0xff]
        %v195 = vld [vmem:[#allocation3 + $0x10] sm:$0xff]
        %v196 = vld [vmem:[#allocation3 + $0x18] sm:$0xff]
        %v197 = vmax.f32 %v177, %v178
        %v198 = vmax.f32 %v197, %v179
        %v199 = vmax.f32 %v198, %v180
        %200 = vmax.xlane.f32.xlu0 %v199
        %v201 = vpop.xlane.xlu0 %200
        %v202 = vmax.f32 %v181, %v182
        %v203 = vmax.f32 %v202, %v183
        %v204 = vmax.f32 %v203, %v184
        %205 = vmax.xlane.f32.xlu0 %v204
        %v206 = vpop.xlane.xlu0 %205
        %v207 = vmax.f32 %v185, %v186
        %v208 = vmax.f32 %v207, %v187
        %v209 = vmax.f32 %v208, %v188
        %210 = vmax.xlane.f32.xlu0 %v209
        %v211 = vpop.xlane.xlu0 %210
        %v212 = vmax.f32 %v189, %v190
        %v213 = vmax.f32 %v212, %v191
        %v214 = vmax.f32 %v213, %v192
        %215 = vmax.xlane.f32.xlu0 %v214
        %v216 = vpop.xlane.xlu0 %215
        %v217 = vmax.f32 %v193, %v201
        %v218 = vmax.f32 %v194, %v206
        %v219 = vmax.f32 %v195, %v211
        %v220 = vmax.f32 %v196, %v216
        %v221 = vsub.f32 %v193, %v217
        %v222 = vsub.f32 %v194, %v218
        %v223 = vsub.f32 %v195, %v219
        %v224 = vsub.f32 %v196, %v220
        %v225 = vmul.f32 %v221, 1.442695
        %v226 = vpow.pop %v225
        %v227 = vmul.f32 %v222, 1.442695
        %v228 = vpow.pop %v227
        %v229 = vmul.f32 %v223, 1.442695
        %v230 = vpow.pop %v229
        %v231 = vmul.f32 %v224, 1.442695
        %v232 = vpow.pop %v231
        %234 = vset.pattern.permute.xlu0 0
        %235 = vperm.xlu0 %234, %v217
        %v236 = vpop.permute.xlu0 %235
        %239 = vset.pattern.permute.xlu0 0
        %240 = vperm.xlu0 %239, %v218
        %v241 = vpop.permute.xlu0 %240
        %244 = vset.pattern.permute.xlu0 0
        %245 = vperm.xlu0 %244, %v219
        %v246 = vpop.permute.xlu0 %245
        %249 = vset.pattern.permute.xlu0 0
        %250 = vperm.xlu0 %249, %v220
        %v251 = vpop.permute.xlu0 %250
        %v253 = vsub.f32 %v177, %v236
        %v254 = vsub.f32 %v178, %v236
        %v255 = vsub.f32 %v179, %v236
        %v256 = vsub.f32 %v180, %v236
        %v257 = vsub.f32 %v181, %v241
        %v258 = vsub.f32 %v182, %v241
        %v259 = vsub.f32 %v183, %v241
        %v260 = vsub.f32 %v184, %v241
        %v261 = vsub.f32 %v185, %v246
        %v262 = vsub.f32 %v186, %v246
        %v263 = vsub.f32 %v187, %v246
        %v264 = vsub.f32 %v188, %v246
        %v265 = vsub.f32 %v189, %v251
        %v266 = vsub.f32 %v190, %v251
        %v267 = vsub.f32 %v191, %v251
        %v268 = vsub.f32 %v192, %v251
        %v269 = vmul.f32 %v253, 1.442695
        %v270 = vpow.pop %v269
        %v271 = vmul.f32 %v254, 1.442695
        %v272 = vpow.pop %v271
        %v273 = vmul.f32 %v255, 1.442695
        %v274 = vpow.pop %v273
        %v275 = vmul.f32 %v256, 1.442695
        %v276 = vpow.pop %v275
        %v277 = vmul.f32 %v257, 1.442695
        %v278 = vpow.pop %v277
        %v279 = vmul.f32 %v258, 1.442695
        %v280 = vpow.pop %v279
        %v281 = vmul.f32 %v259, 1.442695
        %v282 = vpow.pop %v281
        %v283 = vmul.f32 %v260, 1.442695
        %v284 = vpow.pop %v283
        %v285 = vmul.f32 %v261, 1.442695
        %v286 = vpow.pop %v285
        %v287 = vmul.f32 %v262, 1.442695
        %v288 = vpow.pop %v287
        %v289 = vmul.f32 %v263, 1.442695
        %v290 = vpow.pop %v289
        %v291 = vmul.f32 %v264, 1.442695
        %v292 = vpow.pop %v291
        %v293 = vmul.f32 %v265, 1.442695
        %v294 = vpow.pop %v293
        %v295 = vmul.f32 %v266, 1.442695
        %v296 = vpow.pop %v295
        %v297 = vmul.f32 %v267, 1.442695
        %v298 = vpow.pop %v297
        %v299 = vmul.f32 %v268, 1.442695
        %v300 = vpow.pop %v299
        %v301 = vpack.c.bf16 %v278, %v270
        %v302 = vpack.c.bf16 %v280, %v272
        %v303 = vpack.c.bf16 %v282, %v274
        %v304 = vpack.c.bf16 %v284, %v276
        %v305 = vpack.c.bf16 %v294, %v286
        %v306 = vpack.c.bf16 %v296, %v288
        %v307 = vpack.c.bf16 %v298, %v290
        %v308 = vpack.c.bf16 %v300, %v292
        %v309 = vlaneseq
        %v310 = vshrl.u32 %v309, 7
        %v311 = vadd.s32 %v310, 8
        %v312 = vadd.s32 %v310, 16
        %v313 = vadd.s32 %v310, 24
        %v314 = vadd.s32 %v310, 32
        %v315 = vadd.s32 %v310, 40
        %v316 = vadd.s32 %v310, 48
        %v317 = vadd.s32 %v310, 56
        %v318 = vadd.s32 %v310, 64
        %v319 = vadd.s32 %v310, 72
        %v320 = vadd.s32 %v310, 80
        %v321 = vadd.s32 %v310, 88
        %v322 = vadd.s32 %v310, 96
        %v323 = vadd.s32 %v310, 104
        %v324 = vadd.s32 %v310, 112
        %v325 = vadd.s32 %v310, 120
        %v326 = vadd.s32 %v310, 128
        %v327 = vadd.s32 %v310, 136
        %v328 = vadd.s32 %v310, 144
        %v329 = vadd.s32 %v310, 152
        %v330 = vadd.s32 %v310, 160
        %v331 = vadd.s32 %v310, 168
        %v332 = vadd.s32 %v310, 176
        %v333 = vadd.s32 %v310, 184
        %v334 = vadd.s32 %v310, 192
        %v335 = vadd.s32 %v310, 200
        %v336 = vadd.s32 %v310, 208
        %v337 = vadd.s32 %v310, 216
        %v338 = vadd.s32 %v310, 224
        %v339 = vadd.s32 %v310, 232
        %v340 = vadd.s32 %v310, 240
        %v341 = vadd.s32 %v310, 248
        %v342 = vadd.s32 %v310, 256
        %v343 = vadd.s32 %v310, 264
        %v344 = vadd.s32 %v310, 272
        %v345 = vadd.s32 %v310, 280
        %v346 = vadd.s32 %v310, 288
        %v347 = vadd.s32 %v310, 296
        %v348 = vadd.s32 %v310, 304
        %v349 = vadd.s32 %v310, 312
        %v350 = vadd.s32 %v310, 320
        %v351 = vadd.s32 %v310, 328
        %v352 = vadd.s32 %v310, 336
        %v353 = vadd.s32 %v310, 344
        %v354 = vadd.s32 %v310, 352
        %v355 = vadd.s32 %v310, 360
        %v356 = vadd.s32 %v310, 368
        %v357 = vadd.s32 %v310, 376
        %v358 = vadd.s32 %v310, 384
        %v359 = vadd.s32 %v310, 392
        %v360 = vadd.s32 %v310, 400
        %v361 = vadd.s32 %v310, 408
        %v362 = vadd.s32 %v310, 416
        %v363 = vadd.s32 %v310, 424
        %v364 = vadd.s32 %v310, 432
        %v365 = vadd.s32 %v310, 440
        %v366 = vadd.s32 %v310, 448
        %v367 = vadd.s32 %v310, 456
        %v368 = vadd.s32 %v310, 464
        %v369 = vadd.s32 %v310, 472
        %v370 = vadd.s32 %v310, 480
        %v371 = vadd.s32 %v310, 488
        %v372 = vadd.s32 %v310, 496
        %v373 = vadd.s32 %v310, 504
        %s374 = smul.u32 %s23, 512
        %v375 = vstv %s374
        %v376 = vadd.s32 %v310, %v375
        %v377 = vadd.s32 %v311, %v375
        %v378 = vadd.s32 %v312, %v375
        %v379 = vadd.s32 %v313, %v375
        %v380 = vadd.s32 %v314, %v375
        %v381 = vadd.s32 %v315, %v375
        %v382 = vadd.s32 %v316, %v375
        %v383 = vadd.s32 %v317, %v375
        %v384 = vadd.s32 %v318, %v375
        %v385 = vadd.s32 %v319, %v375
        %v386 = vadd.s32 %v320, %v375
        %v387 = vadd.s32 %v321, %v375
        %v388 = vadd.s32 %v322, %v375
        %v389 = vadd.s32 %v323, %v375
        %v390 = vadd.s32 %v324, %v375
        %v391 = vadd.s32 %v325, %v375
        %v392 = vadd.s32 %v326, %v375
        %v393 = vadd.s32 %v327, %v375
        %v394 = vadd.s32 %v328, %v375
        %v395 = vadd.s32 %v329, %v375
        %v396 = vadd.s32 %v330, %v375
        %v397 = vadd.s32 %v331, %v375
        %v398 = vadd.s32 %v332, %v375
        %v399 = vadd.s32 %v333, %v375
        %v400 = vadd.s32 %v334, %v375
        %v401 = vadd.s32 %v335, %v375
        %v402 = vadd.s32 %v336, %v375
        %v403 = vadd.s32 %v337, %v375
        %v404 = vadd.s32 %v338, %v375
        %v405 = vadd.s32 %v339, %v375
        %v406 = vadd.s32 %v340, %v375
        %v407 = vadd.s32 %v341, %v375
        %v408 = vadd.s32 %v342, %v375
        %v409 = vadd.s32 %v343, %v375
        %v410 = vadd.s32 %v344, %v375
        %v411 = vadd.s32 %v345, %v375
        %v412 = vadd.s32 %v346, %v375
        %v413 = vadd.s32 %v347, %v375
        %v414 = vadd.s32 %v348, %v375
        %v415 = vadd.s32 %v349, %v375
        %v416 = vadd.s32 %v350, %v375
        %v417 = vadd.s32 %v351, %v375
        %v418 = vadd.s32 %v352, %v375
        %v419 = vadd.s32 %v353, %v375
        %v420 = vadd.s32 %v354, %v375
        %v421 = vadd.s32 %v355, %v375
        %v422 = vadd.s32 %v356, %v375
        %v423 = vadd.s32 %v357, %v375
        %v424 = vadd.s32 %v358, %v375
        %v425 = vadd.s32 %v359, %v375
        %v426 = vadd.s32 %v360, %v375
        %v427 = vadd.s32 %v361, %v375
        %v428 = vadd.s32 %v362, %v375
        %v429 = vadd.s32 %v363, %v375
        %v430 = vadd.s32 %v364, %v375
        %v431 = vadd.s32 %v365, %v375
        %v432 = vadd.s32 %v366, %v375
        %v433 = vadd.s32 %v367, %v375
        %v434 = vadd.s32 %v368, %v375
        %v435 = vadd.s32 %v369, %v375
        %v436 = vadd.s32 %v370, %v375
        %v437 = vadd.s32 %v371, %v375
        %v438 = vadd.s32 %v372, %v375
        %v439 = vadd.s32 %v373, %v375
        %v440 = vlaneseq
        %v441 = vand.u32 %v440, 127
        %v442 = vand.u32 %v376, 15
        %v443 = vand.u32 %v377, 15
        %v444 = vand.u32 %v378, 15
        %v445 = vand.u32 %v379, 15
        %v446 = vand.u32 %v380, 15
        %v447 = vand.u32 %v381, 15
        %v448 = vand.u32 %v382, 15
        %v449 = vand.u32 %v383, 15
        %v450 = vand.u32 %v384, 15
        %v451 = vand.u32 %v385, 15
        %v452 = vand.u32 %v386, 15
        %v453 = vand.u32 %v387, 15
        %v454 = vand.u32 %v388, 15
        %v455 = vand.u32 %v389, 15
        %v456 = vand.u32 %v390, 15
        %v457 = vand.u32 %v391, 15
        %v458 = vand.u32 %v392, 15
        %v459 = vand.u32 %v393, 15
        %v460 = vand.u32 %v394, 15
        %v461 = vand.u32 %v395, 15
        %v462 = vand.u32 %v396, 15
        %v463 = vand.u32 %v397, 15
        %v464 = vand.u32 %v398, 15
        %v465 = vand.u32 %v399, 15
        %v466 = vand.u32 %v400, 15
        %v467 = vand.u32 %v401, 15
        %v468 = vand.u32 %v402, 15
        %v469 = vand.u32 %v403, 15
        %v470 = vand.u32 %v404, 15
        %v471 = vand.u32 %v405, 15
        %v472 = vand.u32 %v406, 15
        %v473 = vand.u32 %v407, 15
        %v474 = vand.u32 %v408, 15
        %v475 = vand.u32 %v409, 15
        %v476 = vand.u32 %v410, 15
        %v477 = vand.u32 %v411, 15
        %v478 = vand.u32 %v412, 15
        %v479 = vand.u32 %v413, 15
        %v480 = vand.u32 %v414, 15
        %v481 = vand.u32 %v415, 15
        %v482 = vand.u32 %v416, 15
        %v483 = vand.u32 %v417, 15
        %v484 = vand.u32 %v418, 15
        %v485 = vand.u32 %v419, 15
        %v486 = vand.u32 %v420, 15
        %v487 = vand.u32 %v421, 15
        %v488 = vand.u32 %v422, 15
        %v489 = vand.u32 %v423, 15
        %v490 = vand.u32 %v424, 15
        %v491 = vand.u32 %v425, 15
        %v492 = vand.u32 %v426, 15
        %v493 = vand.u32 %v427, 15
        %v494 = vand.u32 %v428, 15
        %v495 = vand.u32 %v429, 15
        %v496 = vand.u32 %v430, 15
        %v497 = vand.u32 %v431, 15
        %v498 = vand.u32 %v432, 15
        %v499 = vand.u32 %v433, 15
        %v500 = vand.u32 %v434, 15
        %v501 = vand.u32 %v435, 15
        %v502 = vand.u32 %v436, 15
        %v503 = vand.u32 %v437, 15
        %v504 = vand.u32 %v438, 15
        %v505 = vand.u32 %v439, 15
        %v506 = vshra.s32 %v376, 4
        %v507 = vshra.s32 %v377, 4
        %v508 = vshra.s32 %v378, 4
        %v509 = vshra.s32 %v379, 4
        %v510 = vshra.s32 %v380, 4
        %v511 = vshra.s32 %v381, 4
        %v512 = vshra.s32 %v382, 4
        %v513 = vshra.s32 %v383, 4
        %v514 = vshra.s32 %v384, 4
        %v515 = vshra.s32 %v385, 4
        %v516 = vshra.s32 %v386, 4
        %v517 = vshra.s32 %v387, 4
        %v518 = vshra.s32 %v388, 4
        %v519 = vshra.s32 %v389, 4
        %v520 = vshra.s32 %v390, 4
        %v521 = vshra.s32 %v391, 4
        %v522 = vshra.s32 %v392, 4
        %v523 = vshra.s32 %v393, 4
        %v524 = vshra.s32 %v394, 4
        %v525 = vshra.s32 %v395, 4
        %v526 = vshra.s32 %v396, 4
        %v527 = vshra.s32 %v397, 4
        %v528 = vshra.s32 %v398, 4
        %v529 = vshra.s32 %v399, 4
        %v530 = vshra.s32 %v400, 4
        %v531 = vshra.s32 %v401, 4
        %v532 = vshra.s32 %v402, 4
        %v533 = vshra.s32 %v403, 4
        %v534 = vshra.s32 %v404, 4
        %v535 = vshra.s32 %v405, 4
        %v536 = vshra.s32 %v406, 4
        %v537 = vshra.s32 %v407, 4
        %v538 = vshra.s32 %v408, 4
        %v539 = vshra.s32 %v409, 4
        %v540 = vshra.s32 %v410, 4
        %v541 = vshra.s32 %v411, 4
        %v542 = vshra.s32 %v412, 4
        %v543 = vshra.s32 %v413, 4
        %v544 = vshra.s32 %v414, 4
        %v545 = vshra.s32 %v415, 4
        %v546 = vshra.s32 %v416, 4
        %v547 = vshra.s32 %v417, 4
        %v548 = vshra.s32 %v418, 4
        %v549 = vshra.s32 %v419, 4
        %v550 = vshra.s32 %v420, 4
        %v551 = vshra.s32 %v421, 4
        %v552 = vshra.s32 %v422, 4
        %v553 = vshra.s32 %v423, 4
        %v554 = vshra.s32 %v424, 4
        %v555 = vshra.s32 %v425, 4
        %v556 = vshra.s32 %v426, 4
        %v557 = vshra.s32 %v427, 4
        %v558 = vshra.s32 %v428, 4
        %v559 = vshra.s32 %v429, 4
        %v560 = vshra.s32 %v430, 4
        %v561 = vshra.s32 %v431, 4
        %v562 = vshra.s32 %v432, 4
        %v563 = vshra.s32 %v433, 4
        %v564 = vshra.s32 %v434, 4
        %v565 = vshra.s32 %v435, 4
        %v566 = vshra.s32 %v436, 4
        %v567 = vshra.s32 %v437, 4
        %v568 = vshra.s32 %v438, 4
        %v569 = vshra.s32 %v439, 4
        %v570 = vand.u32 %v506, 15
        %v571 = vand.u32 %v507, 15
        %v572 = vand.u32 %v508, 15
        %v573 = vand.u32 %v509, 15
        %v574 = vand.u32 %v510, 15
        %v575 = vand.u32 %v511, 15
        %v576 = vand.u32 %v512, 15
        %v577 = vand.u32 %v513, 15
        %v578 = vand.u32 %v514, 15
        %v579 = vand.u32 %v515, 15
        %v580 = vand.u32 %v516, 15
        %v581 = vand.u32 %v517, 15
        %v582 = vand.u32 %v518, 15
        %v583 = vand.u32 %v519, 15
        %v584 = vand.u32 %v520, 15
        %v585 = vand.u32 %v521, 15
        %v586 = vand.u32 %v522, 15
        %v587 = vand.u32 %v523, 15
        %v588 = vand.u32 %v524, 15
        %v589 = vand.u32 %v525, 15
        %v590 = vand.u32 %v526, 15
        %v591 = vand.u32 %v527, 15
        %v592 = vand.u32 %v528, 15
        %v593 = vand.u32 %v529, 15
        %v594 = vand.u32 %v530, 15
        %v595 = vand.u32 %v531, 15
        %v596 = vand.u32 %v532, 15
        %v597 = vand.u32 %v533, 15
        %v598 = vand.u32 %v534, 15
        %v599 = vand.u32 %v535, 15
        %v600 = vand.u32 %v536, 15
        %v601 = vand.u32 %v537, 15
        %v602 = vand.u32 %v538, 15
        %v603 = vand.u32 %v539, 15
        %v604 = vand.u32 %v540, 15
        %v605 = vand.u32 %v541, 15
        %v606 = vand.u32 %v542, 15
        %v607 = vand.u32 %v543, 15
        %v608 = vand.u32 %v544, 15
        %v609 = vand.u32 %v545, 15
        %v610 = vand.u32 %v546, 15
        %v611 = vand.u32 %v547, 15
        %v612 = vand.u32 %v548, 15
        %v613 = vand.u32 %v549, 15
        %v614 = vand.u32 %v550, 15
        %v615 = vand.u32 %v551, 15
        %v616 = vand.u32 %v552, 15
        %v617 = vand.u32 %v553, 15
        %v618 = vand.u32 %v554, 15
        %v619 = vand.u32 %v555, 15
        %v620 = vand.u32 %v556, 15
        %v621 = vand.u32 %v557, 15
        %v622 = vand.u32 %v558, 15
        %v623 = vand.u32 %v559, 15
        %v624 = vand.u32 %v560, 15
        %v625 = vand.u32 %v561, 15
        %v626 = vand.u32 %v562, 15
        %v627 = vand.u32 %v563, 15
        %v628 = vand.u32 %v564, 15
        %v629 = vand.u32 %v565, 15
        %v630 = vand.u32 %v566, 15
        %v631 = vand.u32 %v567, 15
        %v632 = vand.u32 %v568, 15
        %v633 = vand.u32 %v569, 15
        %v634 = vshra.s32 %v376, 8
        %v635 = vshra.s32 %v377, 8
        %v636 = vshra.s32 %v378, 8
        %v637 = vshra.s32 %v379, 8
        %v638 = vshra.s32 %v380, 8
        %v639 = vshra.s32 %v381, 8
        %v640 = vshra.s32 %v382, 8
        %v641 = vshra.s32 %v383, 8
        %v642 = vshra.s32 %v384, 8
        %v643 = vshra.s32 %v385, 8
        %v644 = vshra.s32 %v386, 8
        %v645 = vshra.s32 %v387, 8
        %v646 = vshra.s32 %v388, 8
        %v647 = vshra.s32 %v389, 8
        %v648 = vshra.s32 %v390, 8
        %v649 = vshra.s32 %v391, 8
        %v650 = vshra.s32 %v392, 8
        %v651 = vshra.s32 %v393, 8
        %v652 = vshra.s32 %v394, 8
        %v653 = vshra.s32 %v395, 8
        %v654 = vshra.s32 %v396, 8
        %v655 = vshra.s32 %v397, 8
        %v656 = vshra.s32 %v398, 8
        %v657 = vshra.s32 %v399, 8
        %v658 = vshra.s32 %v400, 8
        %v659 = vshra.s32 %v401, 8
        %v660 = vshra.s32 %v402, 8
        %v661 = vshra.s32 %v403, 8
        %v662 = vshra.s32 %v404, 8
        %v663 = vshra.s32 %v405, 8
        %v664 = vshra.s32 %v406, 8
        %v665 = vshra.s32 %v407, 8
        %v666 = vshra.s32 %v408, 8
        %v667 = vshra.s32 %v409, 8
        %v668 = vshra.s32 %v410, 8
        %v669 = vshra.s32 %v411, 8
        %v670 = vshra.s32 %v412, 8
        %v671 = vshra.s32 %v413, 8
        %v672 = vshra.s32 %v414, 8
        %v673 = vshra.s32 %v415, 8
        %v674 = vshra.s32 %v416, 8
        %v675 = vshra.s32 %v417, 8
        %v676 = vshra.s32 %v418, 8
        %v677 = vshra.s32 %v419, 8
        %v678 = vshra.s32 %v420, 8
        %v679 = vshra.s32 %v421, 8
        %v680 = vshra.s32 %v422, 8
        %v681 = vshra.s32 %v423, 8
        %v682 = vshra.s32 %v424, 8
        %v683 = vshra.s32 %v425, 8
        %v684 = vshra.s32 %v426, 8
        %v685 = vshra.s32 %v427, 8
        %v686 = vshra.s32 %v428, 8
        %v687 = vshra.s32 %v429, 8
        %v688 = vshra.s32 %v430, 8
        %v689 = vshra.s32 %v431, 8
        %v690 = vshra.s32 %v432, 8
        %v691 = vshra.s32 %v433, 8
        %v692 = vshra.s32 %v434, 8
        %v693 = vshra.s32 %v435, 8
        %v694 = vshra.s32 %v436, 8
        %v695 = vshra.s32 %v437, 8
        %v696 = vshra.s32 %v438, 8
        %v697 = vshra.s32 %v439, 8
        %v698 = vcvt.s32.f32 %v442
        %v699 = vcvt.s32.f32 %v443
        %v700 = vcvt.s32.f32 %v444
        %v701 = vcvt.s32.f32 %v445
        %v702 = vcvt.s32.f32 %v446
        %v703 = vcvt.s32.f32 %v447
        %v704 = vcvt.s32.f32 %v448
        %v705 = vcvt.s32.f32 %v449
        %v706 = vcvt.s32.f32 %v450
        %v707 = vcvt.s32.f32 %v451
        %v708 = vcvt.s32.f32 %v452
        %v709 = vcvt.s32.f32 %v453
        %v710 = vcvt.s32.f32 %v454
        %v711 = vcvt.s32.f32 %v455
        %v712 = vcvt.s32.f32 %v456
        %v713 = vcvt.s32.f32 %v457
        %v714 = vcvt.s32.f32 %v458
        %v715 = vcvt.s32.f32 %v459
        %v716 = vcvt.s32.f32 %v460
        %v717 = vcvt.s32.f32 %v461
        %v718 = vcvt.s32.f32 %v462
        %v719 = vcvt.s32.f32 %v463
        %v720 = vcvt.s32.f32 %v464
        %v721 = vcvt.s32.f32 %v465
        %v722 = vcvt.s32.f32 %v466
        %v723 = vcvt.s32.f32 %v467
        %v724 = vcvt.s32.f32 %v468
        %v725 = vcvt.s32.f32 %v469
        %v726 = vcvt.s32.f32 %v470
        %v727 = vcvt.s32.f32 %v471
        %v728 = vcvt.s32.f32 %v472
        %v729 = vcvt.s32.f32 %v473
        %v730 = vcvt.s32.f32 %v474
        %v731 = vcvt.s32.f32 %v475
        %v732 = vcvt.s32.f32 %v476
        %v733 = vcvt.s32.f32 %v477
        %v734 = vcvt.s32.f32 %v478
        %v735 = vcvt.s32.f32 %v479
        %v736 = vcvt.s32.f32 %v480
        %v737 = vcvt.s32.f32 %v481
        %v738 = vcvt.s32.f32 %v482
        %v739 = vcvt.s32.f32 %v483
        %v740 = vcvt.s32.f32 %v484
        %v741 = vcvt.s32.f32 %v485
        %v742 = vcvt.s32.f32 %v486
        %v743 = vcvt.s32.f32 %v487
        %v744 = vcvt.s32.f32 %v488
        %v745 = vcvt.s32.f32 %v489
        %v746 = vcvt.s32.f32 %v490
        %v747 = vcvt.s32.f32 %v491
        %v748 = vcvt.s32.f32 %v492
        %v749 = vcvt.s32.f32 %v493
        %v750 = vcvt.s32.f32 %v494
        %v751 = vcvt.s32.f32 %v495
        %v752 = vcvt.s32.f32 %v496
        %v753 = vcvt.s32.f32 %v497
        %v754 = vcvt.s32.f32 %v498
        %v755 = vcvt.s32.f32 %v499
        %v756 = vcvt.s32.f32 %v500
        %v757 = vcvt.s32.f32 %v501
        %v758 = vcvt.s32.f32 %v502
        %v759 = vcvt.s32.f32 %v503
        %v760 = vcvt.s32.f32 %v504
        %v761 = vcvt.s32.f32 %v505
        %v762 = vmul.f32 %v698, 0.0625
        %v763 = vmul.f32 %v699, 0.0625
        %v764 = vmul.f32 %v700, 0.0625
        %v765 = vmul.f32 %v701, 0.0625
        %v766 = vmul.f32 %v702, 0.0625
        %v767 = vmul.f32 %v703, 0.0625
        %v768 = vmul.f32 %v704, 0.0625
        %v769 = vmul.f32 %v705, 0.0625
        %v770 = vmul.f32 %v706, 0.0625
        %v771 = vmul.f32 %v707, 0.0625
        %v772 = vmul.f32 %v708, 0.0625
        %v773 = vmul.f32 %v709, 0.0625
        %v774 = vmul.f32 %v710, 0.0625
        %v775 = vmul.f32 %v711, 0.0625
        %v776 = vmul.f32 %v712, 0.0625
        %v777 = vmul.f32 %v713, 0.0625
        %v778 = vmul.f32 %v714, 0.0625
        %v779 = vmul.f32 %v715, 0.0625
        %v780 = vmul.f32 %v716, 0.0625
        %v781 = vmul.f32 %v717, 0.0625
        %v782 = vmul.f32 %v718, 0.0625
        %v783 = vmul.f32 %v719, 0.0625
        %v784 = vmul.f32 %v720, 0.0625
        %v785 = vmul.f32 %v721, 0.0625
        %v786 = vmul.f32 %v722, 0.0625
        %v787 = vmul.f32 %v723, 0.0625
        %v788 = vmul.f32 %v724, 0.0625
        %v789 = vmul.f32 %v725, 0.0625
        %v790 = vmul.f32 %v726, 0.0625
        %v791 = vmul.f32 %v727, 0.0625
        %v792 = vmul.f32 %v728, 0.0625
        %v793 = vmul.f32 %v729, 0.0625
        %v794 = vmul.f32 %v730, 0.0625
        %v795 = vmul.f32 %v731, 0.0625
        %v796 = vmul.f32 %v732, 0.0625
        %v797 = vmul.f32 %v733, 0.0625
        %v798 = vmul.f32 %v734, 0.0625
        %v799 = vmul.f32 %v735, 0.0625
        %v800 = vmul.f32 %v736, 0.0625
        %v801 = vmul.f32 %v737, 0.0625
        %v802 = vmul.f32 %v738, 0.0625
        %v803 = vmul.f32 %v739, 0.0625
        %v804 = vmul.f32 %v740, 0.0625
        %v805 = vmul.f32 %v741, 0.0625
        %v806 = vmul.f32 %v742, 0.0625
        %v807 = vmul.f32 %v743, 0.0625
        %v808 = vmul.f32 %v744, 0.0625
        %v809 = vmul.f32 %v745, 0.0625
        %v810 = vmul.f32 %v746, 0.0625
        %v811 = vmul.f32 %v747, 0.0625
        %v812 = vmul.f32 %v748, 0.0625
        %v813 = vmul.f32 %v749, 0.0625
        %v814 = vmul.f32 %v750, 0.0625
        %v815 = vmul.f32 %v751, 0.0625
        %v816 = vmul.f32 %v752, 0.0625
        %v817 = vmul.f32 %v753, 0.0625
        %v818 = vmul.f32 %v754, 0.0625
        %v819 = vmul.f32 %v755, 0.0625
        %v820 = vmul.f32 %v756, 0.0625
        %v821 = vmul.f32 %v757, 0.0625
        %v822 = vmul.f32 %v758, 0.0625
        %v823 = vmul.f32 %v759, 0.0625
        %v824 = vmul.f32 %v760, 0.0625
        %v825 = vmul.f32 %v761, 0.0625
        %v826 = vsub.f32 %v762, 0.5
        %v827 = vsub.f32 %v763, 0.5
        %v828 = vsub.f32 %v764, 0.5
        %v829 = vsub.f32 %v765, 0.5
        %v830 = vsub.f32 %v766, 0.5
        %v831 = vsub.f32 %v767, 0.5
        %v832 = vsub.f32 %v768, 0.5
        %v833 = vsub.f32 %v769, 0.5
        %v834 = vsub.f32 %v770, 0.5
        %v835 = vsub.f32 %v771, 0.5
        %v836 = vsub.f32 %v772, 0.5
        %v837 = vsub.f32 %v773, 0.5
        %v838 = vsub.f32 %v774, 0.5
        %v839 = vsub.f32 %v775, 0.5
        %v840 = vsub.f32 %v776, 0.5
        %v841 = vsub.f32 %v777, 0.5
        %v842 = vsub.f32 %v778, 0.5
        %v843 = vsub.f32 %v779, 0.5
        %v844 = vsub.f32 %v780, 0.5
        %v845 = vsub.f32 %v781, 0.5
        %v846 = vsub.f32 %v782, 0.5
        %v847 = vsub.f32 %v783, 0.5
        %v848 = vsub.f32 %v784, 0.5
        %v849 = vsub.f32 %v785, 0.5
        %v850 = vsub.f32 %v786, 0.5
        %v851 = vsub.f32 %v787, 0.5
        %v852 = vsub.f32 %v788, 0.5
        %v853 = vsub.f32 %v789, 0.5
        %v854 = vsub.f32 %v790, 0.5
        %v855 = vsub.f32 %v791, 0.5
        %v856 = vsub.f32 %v792, 0.5
        %v857 = vsub.f32 %v793, 0.5
        %v858 = vsub.f32 %v794, 0.5
        %v859 = vsub.f32 %v795, 0.5
        %v860 = vsub.f32 %v796, 0.5
        %v861 = vsub.f32 %v797, 0.5
        %v862 = vsub.f32 %v798, 0.5
        %v863 = vsub.f32 %v799, 0.5
        %v864 = vsub.f32 %v800, 0.5
        %v865 = vsub.f32 %v801, 0.5
        %v866 = vsub.f32 %v802, 0.5
        %v867 = vsub.f32 %v803, 0.5
        %v868 = vsub.f32 %v804, 0.5
        %v869 = vsub.f32 %v805, 0.5
        %v870 = vsub.f32 %v806, 0.5
        %v871 = vsub.f32 %v807, 0.5
        %v872 = vsub.f32 %v808, 0.5
        %v873 = vsub.f32 %v809, 0.5
        %v874 = vsub.f32 %v810, 0.5
        %v875 = vsub.f32 %v811, 0.5
        %v876 = vsub.f32 %v812, 0.5
        %v877 = vsub.f32 %v813, 0.5
        %v878 = vsub.f32 %v814, 0.5
        %v879 = vsub.f32 %v815, 0.5
        %v880 = vsub.f32 %v816, 0.5
        %v881 = vsub.f32 %v817, 0.5
        %v882 = vsub.f32 %v818, 0.5
        %v883 = vsub.f32 %v819, 0.5
        %v884 = vsub.f32 %v820, 0.5
        %v885 = vsub.f32 %v821, 0.5
        %v886 = vsub.f32 %v822, 0.5
        %v887 = vsub.f32 %v823, 0.5
        %v888 = vsub.f32 %v824, 0.5
        %v889 = vsub.f32 %v825, 0.5
        %v890 = vcvt.s32.f32 %v570
        %v891 = vcvt.s32.f32 %v571
        %v892 = vcvt.s32.f32 %v572
        %v893 = vcvt.s32.f32 %v573
        %v894 = vcvt.s32.f32 %v574
        %v895 = vcvt.s32.f32 %v575
        %v896 = vcvt.s32.f32 %v576
        %v897 = vcvt.s32.f32 %v577
        %v898 = vcvt.s32.f32 %v578
        %v899 = vcvt.s32.f32 %v579
        %v900 = vcvt.s32.f32 %v580
        %v901 = vcvt.s32.f32 %v581
        %v902 = vcvt.s32.f32 %v582
        %v903 = vcvt.s32.f32 %v583
        %v904 = vcvt.s32.f32 %v584
        %v905 = vcvt.s32.f32 %v585
        %v906 = vcvt.s32.f32 %v586
        %v907 = vcvt.s32.f32 %v587
        %v908 = vcvt.s32.f32 %v588
        %v909 = vcvt.s32.f32 %v589
        %v910 = vcvt.s32.f32 %v590
        %v911 = vcvt.s32.f32 %v591
        %v912 = vcvt.s32.f32 %v592
        %v913 = vcvt.s32.f32 %v593
        %v914 = vcvt.s32.f32 %v594
        %v915 = vcvt.s32.f32 %v595
        %v916 = vcvt.s32.f32 %v596
        %v917 = vcvt.s32.f32 %v597
        %v918 = vcvt.s32.f32 %v598
        %v919 = vcvt.s32.f32 %v599
        %v920 = vcvt.s32.f32 %v600
        %v921 = vcvt.s32.f32 %v601
        %v922 = vcvt.s32.f32 %v602
        %v923 = vcvt.s32.f32 %v603
        %v924 = vcvt.s32.f32 %v604
        %v925 = vcvt.s32.f32 %v605
        %v926 = vcvt.s32.f32 %v606
        %v927 = vcvt.s32.f32 %v607
        %v928 = vcvt.s32.f32 %v608
        %v929 = vcvt.s32.f32 %v609
        %v930 = vcvt.s32.f32 %v610
        %v931 = vcvt.s32.f32 %v611
        %v932 = vcvt.s32.f32 %v612
        %v933 = vcvt.s32.f32 %v613
        %v934 = vcvt.s32.f32 %v614
        %v935 = vcvt.s32.f32 %v615
        %v936 = vcvt.s32.f32 %v616
        %v937 = vcvt.s32.f32 %v617
        %v938 = vcvt.s32.f32 %v618
        %v939 = vcvt.s32.f32 %v619
        %v940 = vcvt.s32.f32 %v620
        %v941 = vcvt.s32.f32 %v621
        %v942 = vcvt.s32.f32 %v622
        %v943 = vcvt.s32.f32 %v623
        %v944 = vcvt.s32.f32 %v624
        %v945 = vcvt.s32.f32 %v625
        %v946 = vcvt.s32.f32 %v626
        %v947 = vcvt.s32.f32 %v627
        %v948 = vcvt.s32.f32 %v628
        %v949 = vcvt.s32.f32 %v629
        %v950 = vcvt.s32.f32 %v630
        %v951 = vcvt.s32.f32 %v631
        %v952 = vcvt.s32.f32 %v632
        %v953 = vcvt.s32.f32 %v633
        %v954 = vmul.f32 %v890, 0.0625
        %v955 = vmul.f32 %v891, 0.0625
        %v956 = vmul.f32 %v892, 0.0625
        %v957 = vmul.f32 %v893, 0.0625
        %v958 = vmul.f32 %v894, 0.0625
        %v959 = vmul.f32 %v895, 0.0625
        %v960 = vmul.f32 %v896, 0.0625
        %v961 = vmul.f32 %v897, 0.0625
        %v962 = vmul.f32 %v898, 0.0625
        %v963 = vmul.f32 %v899, 0.0625
        %v964 = vmul.f32 %v900, 0.0625
        %v965 = vmul.f32 %v901, 0.0625
        %v966 = vmul.f32 %v902, 0.0625
        %v967 = vmul.f32 %v903, 0.0625
        %v968 = vmul.f32 %v904, 0.0625
        %v969 = vmul.f32 %v905, 0.0625
        %v970 = vmul.f32 %v906, 0.0625
        %v971 = vmul.f32 %v907, 0.0625
        %v972 = vmul.f32 %v908, 0.0625
        %v973 = vmul.f32 %v909, 0.0625
        %v974 = vmul.f32 %v910, 0.0625
        %v975 = vmul.f32 %v911, 0.0625
        %v976 = vmul.f32 %v912, 0.0625
        %v977 = vmul.f32 %v913, 0.0625
        %v978 = vmul.f32 %v914, 0.0625
        %v979 = vmul.f32 %v915, 0.0625
        %v980 = vmul.f32 %v916, 0.0625
        %v981 = vmul.f32 %v917, 0.0625
        %v982 = vmul.f32 %v918, 0.0625
        %v983 = vmul.f32 %v919, 0.0625
        %v984 = vmul.f32 %v920, 0.0625
        %v985 = vmul.f32 %v921, 0.0625
        %v986 = vmul.f32 %v922, 0.0625
        %v987 = vmul.f32 %v923, 0.0625
        %v988 = vmul.f32 %v924, 0.0625
        %v989 = vmul.f32 %v925, 0.0625
        %v990 = vmul.f32 %v926, 0.0625
        %v991 = vmul.f32 %v927, 0.0625
        %v992 = vmul.f32 %v928, 0.0625
        %v993 = vmul.f32 %v929, 0.0625
        %v994 = vmul.f32 %v930, 0.0625
        %v995 = vmul.f32 %v931, 0.0625
        %v996 = vmul.f32 %v932, 0.0625
        %v997 = vmul.f32 %v933, 0.0625
        %v998 = vmul.f32 %v934, 0.0625
        %v999 = vmul.f32 %v935, 0.0625
        %v1000 = vmul.f32 %v936, 0.0625
        %v1001 = vmul.f32 %v937, 0.0625
        %v1002 = vmul.f32 %v938, 0.0625
        %v1003 = vmul.f32 %v939, 0.0625
        %v1004 = vmul.f32 %v940, 0.0625
        %v1005 = vmul.f32 %v941, 0.0625
        %v1006 = vmul.f32 %v942, 0.0625
        %v1007 = vmul.f32 %v943, 0.0625
        %v1008 = vmul.f32 %v944, 0.0625
        %v1009 = vmul.f32 %v945, 0.0625
        %v1010 = vmul.f32 %v946, 0.0625
        %v1011 = vmul.f32 %v947, 0.0625
        %v1012 = vmul.f32 %v948, 0.0625
        %v1013 = vmul.f32 %v949, 0.0625
        %v1014 = vmul.f32 %v950, 0.0625
        %v1015 = vmul.f32 %v951, 0.0625
        %v1016 = vmul.f32 %v952, 0.0625
        %v1017 = vmul.f32 %v953, 0.0625
        %v1018 = vsub.f32 %v954, 0.5
        %v1019 = vsub.f32 %v955, 0.5
        %v1020 = vsub.f32 %v956, 0.5
        %v1021 = vsub.f32 %v957, 0.5
        %v1022 = vsub.f32 %v958, 0.5
        %v1023 = vsub.f32 %v959, 0.5
        %v1024 = vsub.f32 %v960, 0.5
        %v1025 = vsub.f32 %v961, 0.5
        %v1026 = vsub.f32 %v962, 0.5
        %v1027 = vsub.f32 %v963, 0.5
        %v1028 = vsub.f32 %v964, 0.5
        %v1029 = vsub.f32 %v965, 0.5
        %v1030 = vsub.f32 %v966, 0.5
        %v1031 = vsub.f32 %v967, 0.5
        %v1032 = vsub.f32 %v968, 0.5
        %v1033 = vsub.f32 %v969, 0.5
        %v1034 = vsub.f32 %v970, 0.5
        %v1035 = vsub.f32 %v971, 0.5
        %v1036 = vsub.f32 %v972, 0.5
        %v1037 = vsub.f32 %v973, 0.5
        %v1038 = vsub.f32 %v974, 0.5
        %v1039 = vsub.f32 %v975, 0.5
        %v1040 = vsub.f32 %v976, 0.5
        %v1041 = vsub.f32 %v977, 0.5
        %v1042 = vsub.f32 %v978, 0.5
        %v1043 = vsub.f32 %v979, 0.5
        %v1044 = vsub.f32 %v980, 0.5
        %v1045 = vsub.f32 %v981, 0.5
        %v1046 = vsub.f32 %v982, 0.5
        %v1047 = vsub.f32 %v983, 0.5
        %v1048 = vsub.f32 %v984, 0.5
        %v1049 = vsub.f32 %v985, 0.5
        %v1050 = vsub.f32 %v986, 0.5
        %v1051 = vsub.f32 %v987, 0.5
        %v1052 = vsub.f32 %v988, 0.5
        %v1053 = vsub.f32 %v989, 0.5
        %v1054 = vsub.f32 %v990, 0.5
        %v1055 = vsub.f32 %v991, 0.5
        %v1056 = vsub.f32 %v992, 0.5
        %v1057 = vsub.f32 %v993, 0.5
        %v1058 = vsub.f32 %v994, 0.5
        %v1059 = vsub.f32 %v995, 0.5
        %v1060 = vsub.f32 %v996, 0.5
        %v1061 = vsub.f32 %v997, 0.5
        %v1062 = vsub.f32 %v998, 0.5
        %v1063 = vsub.f32 %v999, 0.5
        %v1064 = vsub.f32 %v1000, 0.5
        %v1065 = vsub.f32 %v1001, 0.5
        %v1066 = vsub.f32 %v1002, 0.5
        %v1067 = vsub.f32 %v1003, 0.5
        %v1068 = vsub.f32 %v1004, 0.5
        %v1069 = vsub.f32 %v1005, 0.5
        %v1070 = vsub.f32 %v1006, 0.5
        %v1071 = vsub.f32 %v1007, 0.5
        %v1072 = vsub.f32 %v1008, 0.5
        %v1073 = vsub.f32 %v1009, 0.5
        %v1074 = vsub.f32 %v1010, 0.5
        %v1075 = vsub.f32 %v1011, 0.5
        %v1076 = vsub.f32 %v1012, 0.5
        %v1077 = vsub.f32 %v1013, 0.5
        %v1078 = vsub.f32 %v1014, 0.5
        %v1079 = vsub.f32 %v1015, 0.5
        %v1080 = vsub.f32 %v1016, 0.5
        %v1081 = vsub.f32 %v1017, 0.5
        %v1082 = vcvt.s32.f32 %v634
        %v1083 = vcvt.s32.f32 %v635
        %v1084 = vcvt.s32.f32 %v636
        %v1085 = vcvt.s32.f32 %v637
        %v1086 = vcvt.s32.f32 %v638
        %v1087 = vcvt.s32.f32 %v639
        %v1088 = vcvt.s32.f32 %v640
        %v1089 = vcvt.s32.f32 %v641
        %v1090 = vcvt.s32.f32 %v642
        %v1091 = vcvt.s32.f32 %v643
        %v1092 = vcvt.s32.f32 %v644
        %v1093 = vcvt.s32.f32 %v645
        %v1094 = vcvt.s32.f32 %v646
        %v1095 = vcvt.s32.f32 %v647
        %v1096 = vcvt.s32.f32 %v648
        %v1097 = vcvt.s32.f32 %v649
        %v1098 = vcvt.s32.f32 %v650
        %v1099 = vcvt.s32.f32 %v651
        %v1100 = vcvt.s32.f32 %v652
        %v1101 = vcvt.s32.f32 %v653
        %v1102 = vcvt.s32.f32 %v654
        %v1103 = vcvt.s32.f32 %v655
        %v1104 = vcvt.s32.f32 %v656
        %v1105 = vcvt.s32.f32 %v657
        %v1106 = vcvt.s32.f32 %v658
        %v1107 = vcvt.s32.f32 %v659
        %v1108 = vcvt.s32.f32 %v660
        %v1109 = vcvt.s32.f32 %v661
        %v1110 = vcvt.s32.f32 %v662
        %v1111 = vcvt.s32.f32 %v663
        %v1112 = vcvt.s32.f32 %v664
        %v1113 = vcvt.s32.f32 %v665
        %v1114 = vcvt.s32.f32 %v666
        %v1115 = vcvt.s32.f32 %v667
        %v1116 = vcvt.s32.f32 %v668
        %v1117 = vcvt.s32.f32 %v669
        %v1118 = vcvt.s32.f32 %v670
        %v1119 = vcvt.s32.f32 %v671
        %v1120 = vcvt.s32.f32 %v672
        %v1121 = vcvt.s32.f32 %v673
        %v1122 = vcvt.s32.f32 %v674
        %v1123 = vcvt.s32.f32 %v675
        %v1124 = vcvt.s32.f32 %v676
        %v1125 = vcvt.s32.f32 %v677
        %v1126 = vcvt.s32.f32 %v678
        %v1127 = vcvt.s32.f32 %v679
        %v1128 = vcvt.s32.f32 %v680
        %v1129 = vcvt.s32.f32 %v681
        %v1130 = vcvt.s32.f32 %v682
        %v1131 = vcvt.s32.f32 %v683
        %v1132 = vcvt.s32.f32 %v684
        %v1133 = vcvt.s32.f32 %v685
        %v1134 = vcvt.s32.f32 %v686
        %v1135 = vcvt.s32.f32 %v687
        %v1136 = vcvt.s32.f32 %v688
        %v1137 = vcvt.s32.f32 %v689
        %v1138 = vcvt.s32.f32 %v690
        %v1139 = vcvt.s32.f32 %v691
        %v1140 = vcvt.s32.f32 %v692
        %v1141 = vcvt.s32.f32 %v693
        %v1142 = vcvt.s32.f32 %v694
        %v1143 = vcvt.s32.f32 %v695
        %v1144 = vcvt.s32.f32 %v696
        %v1145 = vcvt.s32.f32 %v697
        %v1146 = vmul.f32 %v1082, 0.125
        %v1147 = vmul.f32 %v1083, 0.125
        %v1148 = vmul.f32 %v1084, 0.125
        %v1149 = vmul.f32 %v1085, 0.125
        %v1150 = vmul.f32 %v1086, 0.125
        %v1151 = vmul.f32 %v1087, 0.125
        %v1152 = vmul.f32 %v1088, 0.125
        %v1153 = vmul.f32 %v1089, 0.125
        %v1154 = vmul.f32 %v1090, 0.125
        %v1155 = vmul.f32 %v1091, 0.125
        %v1156 = vmul.f32 %v1092, 0.125
        %v1157 = vmul.f32 %v1093, 0.125
        %v1158 = vmul.f32 %v1094, 0.125
        %v1159 = vmul.f32 %v1095, 0.125
        %v1160 = vmul.f32 %v1096, 0.125
        %v1161 = vmul.f32 %v1097, 0.125
        %v1162 = vmul.f32 %v1098, 0.125
        %v1163 = vmul.f32 %v1099, 0.125
        %v1164 = vmul.f32 %v1100, 0.125
        %v1165 = vmul.f32 %v1101, 0.125
        %v1166 = vmul.f32 %v1102, 0.125
        %v1167 = vmul.f32 %v1103, 0.125
        %v1168 = vmul.f32 %v1104, 0.125
        %v1169 = vmul.f32 %v1105, 0.125
        %v1170 = vmul.f32 %v1106, 0.125
        %v1171 = vmul.f32 %v1107, 0.125
        %v1172 = vmul.f32 %v1108, 0.125
        %v1173 = vmul.f32 %v1109, 0.125
        %v1174 = vmul.f32 %v1110, 0.125
        %v1175 = vmul.f32 %v1111, 0.125
        %v1176 = vmul.f32 %v1112, 0.125
        %v1177 = vmul.f32 %v1113, 0.125
        %v1178 = vmul.f32 %v1114, 0.125
        %v1179 = vmul.f32 %v1115, 0.125
        %v1180 = vmul.f32 %v1116, 0.125
        %v1181 = vmul.f32 %v1117, 0.125
        %v1182 = vmul.f32 %v1118, 0.125
        %v1183 = vmul.f32 %v1119, 0.125
        %v1184 = vmul.f32 %v1120, 0.125
        %v1185 = vmul.f32 %v1121, 0.125
        %v1186 = vmul.f32 %v1122, 0.125
        %v1187 = vmul.f32 %v1123, 0.125
        %v1188 = vmul.f32 %v1124, 0.125
        %v1189 = vmul.f32 %v1125, 0.125
        %v1190 = vmul.f32 %v1126, 0.125
        %v1191 = vmul.f32 %v1127, 0.125
        %v1192 = vmul.f32 %v1128, 0.125
        %v1193 = vmul.f32 %v1129, 0.125
        %v1194 = vmul.f32 %v1130, 0.125
        %v1195 = vmul.f32 %v1131, 0.125
        %v1196 = vmul.f32 %v1132, 0.125
        %v1197 = vmul.f32 %v1133, 0.125
        %v1198 = vmul.f32 %v1134, 0.125
        %v1199 = vmul.f32 %v1135, 0.125
        %v1200 = vmul.f32 %v1136, 0.125
        %v1201 = vmul.f32 %v1137, 0.125
        %v1202 = vmul.f32 %v1138, 0.125
        %v1203 = vmul.f32 %v1139, 0.125
        %v1204 = vmul.f32 %v1140, 0.125
        %v1205 = vmul.f32 %v1141, 0.125
        %v1206 = vmul.f32 %v1142, 0.125
        %v1207 = vmul.f32 %v1143, 0.125
        %v1208 = vmul.f32 %v1144, 0.125
        %v1209 = vmul.f32 %v1145, 0.125
        %v1210 = vsub.f32 %v1146, 0.5
        %v1211 = vsub.f32 %v1147, 0.5
        %v1212 = vsub.f32 %v1148, 0.5
        %v1213 = vsub.f32 %v1149, 0.5
        %v1214 = vsub.f32 %v1150, 0.5
        %v1215 = vsub.f32 %v1151, 0.5
        %v1216 = vsub.f32 %v1152, 0.5
        %v1217 = vsub.f32 %v1153, 0.5
        %v1218 = vsub.f32 %v1154, 0.5
        %v1219 = vsub.f32 %v1155, 0.5
        %v1220 = vsub.f32 %v1156, 0.5
        %v1221 = vsub.f32 %v1157, 0.5
        %v1222 = vsub.f32 %v1158, 0.5
        %v1223 = vsub.f32 %v1159, 0.5
        %v1224 = vsub.f32 %v1160, 0.5
        %v1225 = vsub.f32 %v1161, 0.5
        %v1226 = vsub.f32 %v1162, 0.5
        %v1227 = vsub.f32 %v1163, 0.5
        %v1228 = vsub.f32 %v1164, 0.5
        %v1229 = vsub.f32 %v1165, 0.5
        %v1230 = vsub.f32 %v1166, 0.5
        %v1231 = vsub.f32 %v1167, 0.5
        %v1232 = vsub.f32 %v1168, 0.5
        %v1233 = vsub.f32 %v1169, 0.5
        %v1234 = vsub.f32 %v1170, 0.5
        %v1235 = vsub.f32 %v1171, 0.5
        %v1236 = vsub.f32 %v1172, 0.5
        %v1237 = vsub.f32 %v1173, 0.5
        %v1238 = vsub.f32 %v1174, 0.5
        %v1239 = vsub.f32 %v1175, 0.5
        %v1240 = vsub.f32 %v1176, 0.5
        %v1241 = vsub.f32 %v1177, 0.5
        %v1242 = vsub.f32 %v1178, 0.5
        %v1243 = vsub.f32 %v1179, 0.5
        %v1244 = vsub.f32 %v1180, 0.5
        %v1245 = vsub.f32 %v1181, 0.5
        %v1246 = vsub.f32 %v1182, 0.5
        %v1247 = vsub.f32 %v1183, 0.5
        %v1248 = vsub.f32 %v1184, 0.5
        %v1249 = vsub.f32 %v1185, 0.5
        %v1250 = vsub.f32 %v1186, 0.5
        %v1251 = vsub.f32 %v1187, 0.5
        %v1252 = vsub.f32 %v1188, 0.5
        %v1253 = vsub.f32 %v1189, 0.5
        %v1254 = vsub.f32 %v1190, 0.5
        %v1255 = vsub.f32 %v1191, 0.5
        %v1256 = vsub.f32 %v1192, 0.5
        %v1257 = vsub.f32 %v1193, 0.5
        %v1258 = vsub.f32 %v1194, 0.5
        %v1259 = vsub.f32 %v1195, 0.5
        %v1260 = vsub.f32 %v1196, 0.5
        %v1261 = vsub.f32 %v1197, 0.5
        %v1262 = vsub.f32 %v1198, 0.5
        %v1263 = vsub.f32 %v1199, 0.5
        %v1264 = vsub.f32 %v1200, 0.5
        %v1265 = vsub.f32 %v1201, 0.5
        %v1266 = vsub.f32 %v1202, 0.5
        %v1267 = vsub.f32 %v1203, 0.5
        %v1268 = vsub.f32 %v1204, 0.5
        %v1269 = vsub.f32 %v1205, 0.5
        %v1270 = vsub.f32 %v1206, 0.5
        %v1271 = vsub.f32 %v1207, 0.5
        %v1272 = vsub.f32 %v1208, 0.5
        %v1273 = vsub.f32 %v1209, 0.5
        %vm1274 = vcmp.eq.s32.totalorder %v441, 0
        %vm1275 = vcmp.eq.s32.totalorder %v441, 1
        %vm1276 = vcmp.eq.s32.totalorder %v441, 2
        %vm1277 = vcmp.eq.s32.totalorder %v441, 3
        %v1278 = vsel %vm1277, 1.0, 0.0
        %v1279 = vsel %vm1276, %v1210, %v1278
        %v1280 = vsel %vm1276, %v1211, %v1278
        %v1281 = vsel %vm1276, %v1212, %v1278
        %v1282 = vsel %vm1276, %v1213, %v1278
        %v1283 = vsel %vm1276, %v1214, %v1278
        %v1284 = vsel %vm1276, %v1215, %v1278
        %v1285 = vsel %vm1276, %v1216, %v1278
        %v1286 = vsel %vm1276, %v1217, %v1278
        %v1287 = vsel %vm1276, %v1218, %v1278
        %v1288 = vsel %vm1276, %v1219, %v1278
        %v1289 = vsel %vm1276, %v1220, %v1278
        %v1290 = vsel %vm1276, %v1221, %v1278
        %v1291 = vsel %vm1276, %v1222, %v1278
        %v1292 = vsel %vm1276, %v1223, %v1278
        %v1293 = vsel %vm1276, %v1224, %v1278
        %v1294 = vsel %vm1276, %v1225, %v1278
        %v1295 = vsel %vm1276, %v1226, %v1278
        %v1296 = vsel %vm1276, %v1227, %v1278
        %v1297 = vsel %vm1276, %v1228, %v1278
        %v1298 = vsel %vm1276, %v1229, %v1278
        %v1299 = vsel %vm1276, %v1230, %v1278
        %v1300 = vsel %vm1276, %v1231, %v1278
        %v1301 = vsel %vm1276, %v1232, %v1278
        %v1302 = vsel %vm1276, %v1233, %v1278
        %v1303 = vsel %vm1276, %v1234, %v1278
        %v1304 = vsel %vm1276, %v1235, %v1278
        %v1305 = vsel %vm1276, %v1236, %v1278
        %v1306 = vsel %vm1276, %v1237, %v1278
        %v1307 = vsel %vm1276, %v1238, %v1278
        %v1308 = vsel %vm1276, %v1239, %v1278
        %v1309 = vsel %vm1276, %v1240, %v1278
        %v1310 = vsel %vm1276, %v1241, %v1278
        %v1311 = vsel %vm1276, %v1242, %v1278
        %v1312 = vsel %vm1276, %v1243, %v1278
        %v1313 = vsel %vm1276, %v1244, %v1278
        %v1314 = vsel %vm1276, %v1245, %v1278
        %v1315 = vsel %vm1276, %v1246, %v1278
        %v1316 = vsel %vm1276, %v1247, %v1278
        %v1317 = vsel %vm1276, %v1248, %v1278
        %v1318 = vsel %vm1276, %v1249, %v1278
        %v1319 = vsel %vm1276, %v1250, %v1278
        %v1320 = vsel %vm1276, %v1251, %v1278
        %v1321 = vsel %vm1276, %v1252, %v1278
        %v1322 = vsel %vm1276, %v1253, %v1278
        %v1323 = vsel %vm1276, %v1254, %v1278
        %v1324 = vsel %vm1276, %v1255, %v1278
        %v1325 = vsel %vm1276, %v1256, %v1278
        %v1326 = vsel %vm1276, %v1257, %v1278
        %v1327 = vsel %vm1276, %v1258, %v1278
        %v1328 = vsel %vm1276, %v1259, %v1278
        %v1329 = vsel %vm1276, %v1260, %v1278
        %v1330 = vsel %vm1276, %v1261, %v1278
        %v1331 = vsel %vm1276, %v1262, %v1278
        %v1332 = vsel %vm1276, %v1263, %v1278
        %v1333 = vsel %vm1276, %v1264, %v1278
        %v1334 = vsel %vm1276, %v1265, %v1278
        %v1335 = vsel %vm1276, %v1266, %v1278
        %v1336 = vsel %vm1276, %v1267, %v1278
        %v1337 = vsel %vm1276, %v1268, %v1278
        %v1338 = vsel %vm1276, %v1269, %v1278
        %v1339 = vsel %vm1276, %v1270, %v1278
        %v1340 = vsel %vm1276, %v1271, %v1278
        %v1341 = vsel %vm1276, %v1272, %v1278
        %v1342 = vsel %vm1276, %v1273, %v1278
        %v1343 = vsel %vm1275, %v1018, %v1279
        %v1344 = vsel %vm1275, %v1019, %v1280
        %v1345 = vsel %vm1275, %v1020, %v1281
        %v1346 = vsel %vm1275, %v1021, %v1282
        %v1347 = vsel %vm1275, %v1022, %v1283
        %v1348 = vsel %vm1275, %v1023, %v1284
        %v1349 = vsel %vm1275, %v1024, %v1285
        %v1350 = vsel %vm1275, %v1025, %v1286
        %v1351 = vsel %vm1275, %v1026, %v1287
        %v1352 = vsel %vm1275, %v1027, %v1288
        %v1353 = vsel %vm1275, %v1028, %v1289
        %v1354 = vsel %vm1275, %v1029, %v1290
        %v1355 = vsel %vm1275, %v1030, %v1291
        %v1356 = vsel %vm1275, %v1031, %v1292
        %v1357 = vsel %vm1275, %v1032, %v1293
        %v1358 = vsel %vm1275, %v1033, %v1294
        %v1359 = vsel %vm1275, %v1034, %v1295
        %v1360 = vsel %vm1275, %v1035, %v1296
        %v1361 = vsel %vm1275, %v1036, %v1297
        %v1362 = vsel %vm1275, %v1037, %v1298
        %v1363 = vsel %vm1275, %v1038, %v1299
        %v1364 = vsel %vm1275, %v1039, %v1300
        %v1365 = vsel %vm1275, %v1040, %v1301
        %v1366 = vsel %vm1275, %v1041, %v1302
        %v1367 = vsel %vm1275, %v1042, %v1303
        %v1368 = vsel %vm1275, %v1043, %v1304
        %v1369 = vsel %vm1275, %v1044, %v1305
        %v1370 = vsel %vm1275, %v1045, %v1306
        %v1371 = vsel %vm1275, %v1046, %v1307
        %v1372 = vsel %vm1275, %v1047, %v1308
        %v1373 = vsel %vm1275, %v1048, %v1309
        %v1374 = vsel %vm1275, %v1049, %v1310
        %v1375 = vsel %vm1275, %v1050, %v1311
        %v1376 = vsel %vm1275, %v1051, %v1312
        %v1377 = vsel %vm1275, %v1052, %v1313
        %v1378 = vsel %vm1275, %v1053, %v1314
        %v1379 = vsel %vm1275, %v1054, %v1315
        %v1380 = vsel %vm1275, %v1055, %v1316
        %v1381 = vsel %vm1275, %v1056, %v1317
        %v1382 = vsel %vm1275, %v1057, %v1318
        %v1383 = vsel %vm1275, %v1058, %v1319
        %v1384 = vsel %vm1275, %v1059, %v1320
        %v1385 = vsel %vm1275, %v1060, %v1321
        %v1386 = vsel %vm1275, %v1061, %v1322
        %v1387 = vsel %vm1275, %v1062, %v1323
        %v1388 = vsel %vm1275, %v1063, %v1324
        %v1389 = vsel %vm1275, %v1064, %v1325
        %v1390 = vsel %vm1275, %v1065, %v1326
        %v1391 = vsel %vm1275, %v1066, %v1327
        %v1392 = vsel %vm1275, %v1067, %v1328
        %v1393 = vsel %vm1275, %v1068, %v1329
        %v1394 = vsel %vm1275, %v1069, %v1330
        %v1395 = vsel %vm1275, %v1070, %v1331
        %v1396 = vsel %vm1275, %v1071, %v1332
        %v1397 = vsel %vm1275, %v1072, %v1333
        %v1398 = vsel %vm1275, %v1073, %v1334
        %v1399 = vsel %vm1275, %v1074, %v1335
        %v1400 = vsel %vm1275, %v1075, %v1336
        %v1401 = vsel %vm1275, %v1076, %v1337
        %v1402 = vsel %vm1275, %v1077, %v1338
        %v1403 = vsel %vm1275, %v1078, %v1339
        %v1404 = vsel %vm1275, %v1079, %v1340
        %v1405 = vsel %vm1275, %v1080, %v1341
        %v1406 = vsel %vm1275, %v1081, %v1342
        %v1407 = vsel %vm1274, %v826, %v1343
        %v1408 = vsel %vm1274, %v827, %v1344
        %v1409 = vsel %vm1274, %v828, %v1345
        %v1410 = vsel %vm1274, %v829, %v1346
        %v1411 = vsel %vm1274, %v830, %v1347
        %v1412 = vsel %vm1274, %v831, %v1348
        %v1413 = vsel %vm1274, %v832, %v1349
        %v1414 = vsel %vm1274, %v833, %v1350
        %v1415 = vsel %vm1274, %v834, %v1351
        %v1416 = vsel %vm1274, %v835, %v1352
        %v1417 = vsel %vm1274, %v836, %v1353
        %v1418 = vsel %vm1274, %v837, %v1354
        %v1419 = vsel %vm1274, %v838, %v1355
        %v1420 = vsel %vm1274, %v839, %v1356
        %v1421 = vsel %vm1274, %v840, %v1357
        %v1422 = vsel %vm1274, %v841, %v1358
        %v1423 = vsel %vm1274, %v842, %v1359
        %v1424 = vsel %vm1274, %v843, %v1360
        %v1425 = vsel %vm1274, %v844, %v1361
        %v1426 = vsel %vm1274, %v845, %v1362
        %v1427 = vsel %vm1274, %v846, %v1363
        %v1428 = vsel %vm1274, %v847, %v1364
        %v1429 = vsel %vm1274, %v848, %v1365
        %v1430 = vsel %vm1274, %v849, %v1366
        %v1431 = vsel %vm1274, %v850, %v1367
        %v1432 = vsel %vm1274, %v851, %v1368
        %v1433 = vsel %vm1274, %v852, %v1369
        %v1434 = vsel %vm1274, %v853, %v1370
        %v1435 = vsel %vm1274, %v854, %v1371
        %v1436 = vsel %vm1274, %v855, %v1372
        %v1437 = vsel %vm1274, %v856, %v1373
        %v1438 = vsel %vm1274, %v857, %v1374
        %v1439 = vsel %vm1274, %v858, %v1375
        %v1440 = vsel %vm1274, %v859, %v1376
        %v1441 = vsel %vm1274, %v860, %v1377
        %v1442 = vsel %vm1274, %v861, %v1378
        %v1443 = vsel %vm1274, %v862, %v1379
        %v1444 = vsel %vm1274, %v863, %v1380
        %v1445 = vsel %vm1274, %v864, %v1381
        %v1446 = vsel %vm1274, %v865, %v1382
        %v1447 = vsel %vm1274, %v866, %v1383
        %v1448 = vsel %vm1274, %v867, %v1384
        %v1449 = vsel %vm1274, %v868, %v1385
        %v1450 = vsel %vm1274, %v869, %v1386
        %v1451 = vsel %vm1274, %v870, %v1387
        %v1452 = vsel %vm1274, %v871, %v1388
        %v1453 = vsel %vm1274, %v872, %v1389
        %v1454 = vsel %vm1274, %v873, %v1390
        %v1455 = vsel %vm1274, %v874, %v1391
        %v1456 = vsel %vm1274, %v875, %v1392
        %v1457 = vsel %vm1274, %v876, %v1393
        %v1458 = vsel %vm1274, %v877, %v1394
        %v1459 = vsel %vm1274, %v878, %v1395
        %v1460 = vsel %vm1274, %v879, %v1396
        %v1461 = vsel %vm1274, %v880, %v1397
        %v1462 = vsel %vm1274, %v881, %v1398
        %v1463 = vsel %vm1274, %v882, %v1399
        %v1464 = vsel %vm1274, %v883, %v1400
        %v1465 = vsel %vm1274, %v884, %v1401
        %v1466 = vsel %vm1274, %v885, %v1402
        %v1467 = vsel %vm1274, %v886, %v1403
        %v1468 = vsel %vm1274, %v887, %v1404
        %v1469 = vsel %vm1274, %v888, %v1405
        %v1470 = vsel %vm1274, %v889, %v1406
        %v1471 = vpack.c.bf16 %v1408, %v1407
        %v1472 = vpack.c.bf16 %v1410, %v1409
        %v1473 = vpack.c.bf16 %v1412, %v1411
        %v1474 = vpack.c.bf16 %v1414, %v1413
        %v1475 = vpack.c.bf16 %v1416, %v1415
        %v1476 = vpack.c.bf16 %v1418, %v1417
        %v1477 = vpack.c.bf16 %v1420, %v1419
        %v1478 = vpack.c.bf16 %v1422, %v1421
        %v1479 = vpack.c.bf16 %v1424, %v1423
        %v1480 = vpack.c.bf16 %v1426, %v1425
        %v1481 = vpack.c.bf16 %v1428, %v1427
        %v1482 = vpack.c.bf16 %v1430, %v1429
        %v1483 = vpack.c.bf16 %v1432, %v1431
        %v1484 = vpack.c.bf16 %v1434, %v1433
        %v1485 = vpack.c.bf16 %v1436, %v1435
        %v1486 = vpack.c.bf16 %v1438, %v1437
        %v1487 = vpack.c.bf16 %v1440, %v1439
        %v1488 = vpack.c.bf16 %v1442, %v1441
        %v1489 = vpack.c.bf16 %v1444, %v1443
        %v1490 = vpack.c.bf16 %v1446, %v1445
        %v1491 = vpack.c.bf16 %v1448, %v1447
        %v1492 = vpack.c.bf16 %v1450, %v1449
        %v1493 = vpack.c.bf16 %v1452, %v1451
        %v1494 = vpack.c.bf16 %v1454, %v1453
        %v1495 = vpack.c.bf16 %v1456, %v1455
        %v1496 = vpack.c.bf16 %v1458, %v1457
        %v1497 = vpack.c.bf16 %v1460, %v1459
        %v1498 = vpack.c.bf16 %v1462, %v1461
        %v1499 = vpack.c.bf16 %v1464, %v1463
        %v1500 = vpack.c.bf16 %v1466, %v1465
        %v1501 = vpack.c.bf16 %v1468, %v1467
        %v1502 = vpack.c.bf16 %v1470, %v1469
        %v1503 = vld [vmem:[#allocation2] sm:$0xff]
        %v1504 = vld [vmem:[#allocation2 + $0x8] sm:$0xff]
        %v1505 = vld [vmem:[#allocation2 + $0x10] sm:$0xff]
        %v1506 = vld [vmem:[#allocation2 + $0x18] sm:$0xff]
        %1508 = vset.pattern.permute.xlu0 0
        %1509 = vperm.xlu0 %1508, %v226
        %v1510 = vpop.permute.xlu0 %1509
        %1513 = vset.pattern.permute.xlu0 0
        %1514 = vperm.xlu0 %1513, %v228
        %v1515 = vpop.permute.xlu0 %1514
        %1518 = vset.pattern.permute.xlu0 0
        %1519 = vperm.xlu0 %1518, %v230
        %v1520 = vpop.permute.xlu0 %1519
        %1523 = vset.pattern.permute.xlu0 0
        %1524 = vperm.xlu0 %1523, %v232
        %v1525 = vpop.permute.xlu0 %1524
        %v1527 = vmul.f32 %v1510, %v1503
        %v1528 = vmul.f32 %v1515, %v1504
        %v1529 = vmul.f32 %v1520, %v1505
        %v1530 = vmul.f32 %v1525, %v1506
        %1531 = vmatprep.subr.bf16.mxu0 0
        %1532 = vmatpush1.bf16.msra.mxu0 %v1471
        %1533 = vmatprep.subr.bf16.mxu0 0
        %1534 = vmatpush1.bf16.msra.mxu0 %v1472
        %1535 = vmatprep.subr.bf16.mxu0 0
        %1536 = vmatpush1.bf16.msra.mxu0 %v1473
        %1537 = vmatprep.subr.bf16.mxu0 0
        %1538 = vmatpush1.bf16.msra.mxu0 %v1474
        %1539 = vmatprep.subr.bf16.mxu0 0
        %1540 = vmatpush1.bf16.msra.mxu0 %v1475
        %1541 = vmatprep.subr.bf16.mxu0 0
        %1542 = vmatpush1.bf16.msra.mxu0 %v1476
        %1543 = vmatprep.subr.bf16.mxu0 0
        %1544 = vmatpush1.bf16.msra.mxu0 %v1477
        %1545 = vmatprep.subr.bf16.mxu0 0
        %1546 = vmatpush1.bf16.msra.mxu0 %v1478
        %1547 = vmatprep.subr.bf16.mxu0 0
        %1548 = vmatpush1.bf16.msra.mxu0 %v1479
        %1549 = vmatprep.subr.bf16.mxu0 0
        %1550 = vmatpush1.bf16.msra.mxu0 %v1480
        %1551 = vmatprep.subr.bf16.mxu0 0
        %1552 = vmatpush1.bf16.msra.mxu0 %v1481
        %1553 = vmatprep.subr.bf16.mxu0 0
        %1554 = vmatpush1.bf16.msra.mxu0 %v1482
        %1555 = vmatprep.subr.bf16.mxu0 0
        %1556 = vmatpush1.bf16.msra.mxu0 %v1483
        %1557 = vmatprep.subr.bf16.mxu0 0
        %1558 = vmatpush1.bf16.msra.mxu0 %v1484
        %1559 = vmatprep.subr.bf16.mxu0 0
        %1560 = vmatpush1.bf16.msra.mxu0 %v1485
        %1561 = vmatprep.subr.bf16.mxu0 0
        %1562 = vmatpush1.bf16.msra.mxu0 %v1486
        %1563 = vmatprep.mubr.bf16.mxu0 %v302
        %1564 = vmatmul.mubr.bf16.gmra.mrb[0].mxu0 %v301
        %v1565 = vpop.f32.mrb[0].mxu0
        %v1566 = vadd.f32 0.0, %v1565
        %v1567 = vpop.f32.mrb[0].mxu0
        %v1568 = vpop.f32.mrb[0].mxu0
        %v1569 = vadd.f32 0.0, %v1568
        %v1570 = vpop.f32.mrb[0].mxu0
        %1571 = vmatprep.mubr.bf16.mxu0 %v306
        %1572 = vmatmul.mubr.bf16.gmra.mrb[0].mxu0 %v305
        %v1573 = vpop.f32.mrb[0].mxu0
        %v1574 = vadd.f32 0.0, %v1573
        %v1575 = vpop.f32.mrb[0].mxu0
        %v1576 = vpop.f32.mrb[0].mxu0
        %v1577 = vadd.f32 0.0, %v1576
        %v1578 = vpop.f32.mrb[0].mxu0
        %1579 = vdwg.mxu0
        %1580 = vmatprep.subr.bf16.mxu0 0
        %1581 = vmatpush1.bf16.msra.mxu0 %v1487
        %1582 = vmatprep.subr.bf16.mxu0 0
        %1583 = vmatpush1.bf16.msra.mxu0 %v1488
        %1584 = vmatprep.subr.bf16.mxu0 0
        %1585 = vmatpush1.bf16.msra.mxu0 %v1489
        %1586 = vmatprep.subr.bf16.mxu0 0
        %1587 = vmatpush1.bf16.msra.mxu0 %v1490
        %1588 = vmatprep.subr.bf16.mxu0 0
        %1589 = vmatpush1.bf16.msra.mxu0 %v1491
        %1590 = vmatprep.subr.bf16.mxu0 0
        %1591 = vmatpush1.bf16.msra.mxu0 %v1492
        %1592 = vmatprep.subr.bf16.mxu0 0
        %1593 = vmatpush1.bf16.msra.mxu0 %v1493
        %1594 = vmatprep.subr.bf16.mxu0 0
        %1595 = vmatpush1.bf16.msra.mxu0 %v1494
        %1596 = vmatprep.subr.bf16.mxu0 0
        %1597 = vmatpush1.bf16.msra.mxu0 %v1495
        %1598 = vmatprep.subr.bf16.mxu0 0
        %1599 = vmatpush1.bf16.msra.mxu0 %v1496
        %1600 = vmatprep.subr.bf16.mxu0 0
        %1601 = vmatpush1.bf16.msra.mxu0 %v1497
        %1602 = vmatprep.subr.bf16.mxu0 0
        %1603 = vmatpush1.bf16.msra.mxu0 %v1498
        %1604 = vmatprep.subr.bf16.mxu0 0
        %1605 = vmatpush1.bf16.msra.mxu0 %v1499
        %1606 = vmatprep.subr.bf16.mxu0 0
        %1607 = vmatpush1.bf16.msra.mxu0 %v1500
        %1608 = vmatprep.subr.bf16.mxu0 0
        %1609 = vmatpush1.bf16.msra.mxu0 %v1501
        %1610 = vmatprep.subr.bf16.mxu0 0
        %1611 = vmatpush1.bf16.msra.mxu0 %v1502
        %1612 = vmatprep.mubr.bf16.mxu0 %v304
        %1613 = vmatmul.mubr.bf16.gmra.mrb[0].mxu0 %v303
        %v1614 = vpop.f32.mrb[0].mxu0
        %v1615 = vadd.f32 %v1566, %v1614
        %v1616 = vpop.f32.mrb[0].mxu0
        %v1617 = vpop.f32.mrb[0].mxu0
        %v1618 = vadd.f32 %v1569, %v1617
        %v1619 = vpop.f32.mrb[0].mxu0
        %1620 = vmatprep.mubr.bf16.mxu0 %v308
        %1621 = vmatmul.mubr.bf16.gmra.mrb[0].mxu0 %v307
        %v1622 = vpop.f32.mrb[0].mxu0
        %v1623 = vadd.f32 %v1574, %v1622
        %v1624 = vpop.f32.mrb[0].mxu0
        %v1625 = vpop.f32.mrb[0].mxu0
        %v1626 = vadd.f32 %v1577, %v1625
        %v1627 = vpop.f32.mrb[0].mxu0
        %1628 = vdwg.mxu0
        %v1629 = vadd.f32 %v1527, %v1615
        %v1630 = vadd.f32 %v1528, %v1618
        %v1631 = vadd.f32 %v1529, %v1623
        %v1632 = vadd.f32 %v1530, %v1626
        %1633 = vst [vmem:[#allocation2] sm:$0xff] %v1629
        %1634 = vst [vmem:[#allocation2 + $0x8] sm:$0xff] %v1630
        %1635 = vst [vmem:[#allocation2 + $0x10] sm:$0xff] %v1631
        %1636 = vst [vmem:[#allocation2 + $0x18] sm:$0xff] %v1632
        %vm1637 = vcmask 7168
        %1638 = vst.msk [vmem:[#allocation3] sm:$0xff] %vm1637, %v217
        %1639 = vst.msk [vmem:[#allocation3 + $0x8] sm:$0xff] %vm1637, %v218
        %1640 = vst.msk [vmem:[#allocation3 + $0x10] sm:$0xff] %vm1637, %v219
        %1641 = vst.msk [vmem:[#allocation3 + $0x18] sm:$0xff] %vm1637, %v220
        %p1642 = scmp.eq.s32.totalorder %s23, 3
        // Predicated region
        $region33: #{tpu_custom_call.1} parent=23 // pred_check
          %p1643 = pneg %p1642
        $region34: #{tpu_custom_call.1} parent=23 // pred_check_branch
          %1645 = sbr.rel (%p1643) target = $region36
        $region35: #{tpu_custom_call.1} parent=23 // pred_region
          %v1646 = vld [vmem:[#allocation2] sm:$0xff]
          %v1647 = vld [vmem:[#allocation2 + $0x8] sm:$0xff]
          %v1648 = vld [vmem:[#allocation2 + $0x10] sm:$0xff]
          %v1649 = vld [vmem:[#allocation2 + $0x18] sm:$0xff]
          %v1650 = vrcp.pop %v1646
          %v1651 = vmul.f32 1.0, %v1650
          %v1652 = vrcp.pop %v1647
          %v1653 = vmul.f32 1.0, %v1652
          %v1654 = vrcp.pop %v1648
          %v1655 = vmul.f32 1.0, %v1654
          %v1656 = vrcp.pop %v1649
          %v1657 = vmul.f32 1.0, %v1656
          %1659 = vset.pattern.permute.xlu0 3
          %1660 = vperm.xlu0 %1659, %v1651
          %v1661 = vpop.permute.xlu0 %1660
          %1664 = vset.pattern.permute.xlu0 3
          %1665 = vperm.xlu0 %1664, %v1653
          %v1666 = vpop.permute.xlu0 %1665
          %1669 = vset.pattern.permute.xlu0 3
          %1670 = vperm.xlu0 %1669, %v1655
          %v1671 = vpop.permute.xlu0 %1670
          %1674 = vset.pattern.permute.xlu0 3
          %1675 = vperm.xlu0 %1674, %v1657
          %v1676 = vpop.permute.xlu0 %1675
          %v1678 = vmul.f32 %v1646, %v1661
          %v1679 = vmul.f32 %v1647, %v1666
          %v1680 = vmul.f32 %v1648, %v1671
          %v1681 = vmul.f32 %v1649, %v1676
          %1682 = vst [vmem:[%s151] sm:$0xff] %v1678
          %1683 = vst [vmem:[%s151 + $0x8] sm:$0xff] %v1679
          %1684 = vst [vmem:[%s151 + $0x10] sm:$0xff] %v1680
          %1685 = vst [vmem:[%s151 + $0x18] sm:$0xff] %v1681
        $region36: #{tpu_custom_call.1} parent=23 // pred_fallthru
          _
        %s1686 = sand.u32 %s66, 1
        %s1687 = scalar_lea.sflag [#allocation6], %s1686
        %s1688 = sand.u32 %s66, 1
        %s1689 = smul.addr %s1688, 32
        %s1690 = scalar_lea.vmem [#allocation7], %s1689
        // Predicated region
        $region37: #{tpu_custom_call.1} parent=23 // pred_check
          %p1691 = pneg %p76
        $region38: #{tpu_custom_call.1} parent=23 // pred_check_branch
          %1693 = sbr.rel (%p1691) target = $region40
        $region39: #{tpu_custom_call.1} parent=23 // pred_region
          %s1694 = smul.u32 4, %s22
          %s1696 = ssub.s32 512, 512
          %1697 = vsyncadd %s1687, %s1696
          %s1698 = smul.addr %s1694, 128
          %s1699 = scalar_lea.hbm %s1, %s1698
          %s1700 = sshll.u32 %s1690, 4
          %s1701 = int_to_ptr.vmem [resolvable:$true] %s1700
          %1706 = dma.vmem_to_hbm [thread:$0]  %s1701, 512, %s1699, %s1687, 128, 128, 8
        $region40: #{tpu_custom_call.1} parent=23 // pred_fallthru
          _
      $region24: #{tpu_custom_call.1} parent=5 // pred_fallthru
        _
      %p1707 = scmp.le.s32.totalorder 2, %s13
      // Predicated region
      $region41: #{tpu_custom_call.1} parent=5 // pred_check
        %p1708 = pneg %p1707
      $region42: #{tpu_custom_call.1} parent=5 // pred_check_branch
        %1710 = sbr.rel (%p1708) target = $region44
      $region43: #{tpu_custom_call.1} parent=5 // pred_region
        %s1711 = ssub.s32 %s13, 2
        // Predicated region
        $region45: #{tpu_custom_call.1} parent=43 // pred_check
          %p1712 = pneg %p82
        $region46: #{tpu_custom_call.1} parent=43 // pred_check_branch
          %1714 = sbr.rel (%p1712) target = $region48
        $region47: #{tpu_custom_call.1} parent=43 // pred_region
          %s1715 = sand.u32 %s67, 1
          %s1716 = scalar_lea.sflag [#allocation6], %s1715
          %s1717 = sand.u32 %s67, 1
          %s1718 = smul.addr %s1717, 32
          %s1719 = scalar_lea.vmem [#allocation7], %s1718
          %1720 = dma.done %s1716, 512
        $region48: #{tpu_custom_call.1} parent=43 // pred_fallthru
          _
      $region44: #{tpu_custom_call.1} parent=5 // pred_fallthru
        _
    $region6: #{tpu_custom_call.1} parent=1 // loop_footer
      %s17 = sadd.s32 1, %s13
    $region7: #{tpu_custom_call.1} parent=1 // loop_footer_branch
      %12 = sbr.rel target = $region3
    $region8: #{tpu_custom_call.1} parent=1 // loop_exit
      _
    %1721 = vsyncpa [#allocation5], 1
    %s1722 = scalar_lea.sflag [#allocation5], 1
    %1723 = vsyncpa %s1722, 1
    %1724 = vsyncpa [#allocation6], 1
    %s1725 = scalar_lea.sflag [#allocation6], 1
    %1726 = vsyncpa %s1725, 1

</llo_original>
